<compile_context>
chip_gen: v5e
topology: v5e:2x2
jax: 0.10.0
libtpu: 0.0.40
codegen_flags: <defaults>
</compile_context>

<pallas_src>
import functools

import jax
import jax.numpy as jnp
from jax import lax
from jax.experimental import pallas as pl
from jax.experimental.pallas import tpu as pltpu


def _round_up(a, b):
    return (a + b - 1) // b * b


def _pick_row_tile(R, HB, row_tile):
    """Largest multiple of HB <= row_tile, preferring one that divides R
    (so no wrapper-side row padding / jnp.pad copy is needed)."""
    cap = min(_round_up(row_tile, HB), _round_up(R, HB))
    cap = max(cap, HB)
    for cand in range(cap, HB - 1, -HB):
        if R % cand == 0 and 4 * cand >= cap:
            return cand
    return cap  # no good divisor -> caller falls back to row padding


def _tds_kernel(xm_ref, xh_ref, w_ref, p_ref, o_ref, acc_ref, *,
                n, kw, inv_c, eps, use_mask, cast):
    """One row tile of the fused conv + bias + ReLU + residual + LayerNorm.

    xm_ref : (Rt, Cp)  main input rows (window rows [0, Rt) of this tile)
    xh_ref : (HB, Cp)  halo rows just past the main block (window rows [Rt, Rt+HB))
    w_ref  : (K, Cp, Cp) per-tap channel-mixing matrices (block-diag over width)
    p_ref  : (4, Cp)   f32 params: conv bias, gamma, beta, lane mask
    o_ref  : (Rt, Cp)  output rows
    acc_ref: (Rt, Cp)  f32 accumulator scratch
    """
    rt = o_ref.shape[0]
    h = (kw - 1) * n                     # residual offset / true halo rows
    f32 = jnp.float32

    p = p_ref[...].astype(f32)
    bias, gamma, beta = p[0:1], p[1:2], p[2:3]

    def xin(ref, start, size):
        v = ref[pl.ds(start, size), :]
        return v if cast is None else v.astype(cast)

    # Tap 0 straight from the main block (no staging copy); fold in the bias.
    acc_ref[...] = jnp.dot(xin(xm_ref, 0, rt), w_ref[0],
                           preferred_element_type=f32) + bias

    # Taps k > 0: rows split between the main block and the tiny halo block.
    for k in range(1, kw):
        s = k * n
        if rt - s > 0:
            acc_ref[pl.ds(0, rt - s), :] += jnp.dot(
                xin(xm_ref, s, rt - s), w_ref[k], preferred_element_type=f32)
        if s > 0:
            acc_ref[pl.ds(rt - s, s), :] += jnp.dot(
                xin(xh_ref, 0, s), w_ref[k], preferred_element_type=f32)

    # ReLU + residual (residual rows == window rows [h, h + rt) == inputs[-T_out:]).
    if rt - h > 0:
        acc_ref[pl.ds(0, rt - h), :] = (
            jnp.maximum(acc_ref[pl.ds(0, rt - h), :], 0.0)
            + xm_ref[pl.ds(h, rt - h), :].astype(f32))
    if h > 0:
        acc_ref[pl.ds(rt - h, h), :] = (
            jnp.maximum(acc_ref[pl.ds(rt - h, h), :], 0.0)
            + xh_ref[pl.ds(0, h), :].astype(f32))

    # LayerNorm over the true C features, one-pass stats (lane padding masked).
    y = acc_ref[...]
    if use_mask:
        mask = p[3:4]
        ym = y * mask
        s1 = jnp.sum(ym, axis=-1, keepdims=True)
        s2 = jnp.sum(ym * y, axis=-1, keepdims=True)
    else:
        s1 = jnp.sum(y, axis=-1, keepdims=True)
        s2 = jnp.sum(y * y, axis=-1, keepdims=True)
    mean = s1 * inv_c
    var = s2 * inv_c - mean * mean
    rstd = lax.rsqrt(var + eps)
    o_ref[...] = ((y - mean) * (gamma * rstd) + beta).astype(o_ref.dtype)


def tds_conv2d_block(x, conv_w, conv_b, ln_w, ln_b, *, channels, width,
                     kernel_width, eps=1e-5, row_tile=2048, matmul_dtype=None):
    """x: (T_in, N, C) with C == channels * width.  Returns (T_out, N, C).

    row_tile: rows (== T_out*N flattened) per grid step.  2048-4096 for
    v5e/v6e; keep the grid at >= 8 steps on v7x.  matmul_dtype=jnp.bfloat16
    casts only the MXU operands (relaxes accuracy to ~1e-2/1e-3).
    """
    T_in, N, C = x.shape
    assert C == channels * width
    K = kernel_width
    T_out = T_in - K + 1
    assert T_out >= 1
    R = T_out * N                    # output rows (LayerNorm rows)
    H = (K - 1) * N                  # halo rows needed per tile

    LANE, SUB = 128, 8
    # Perf note: N % 8 == 0 and C % 128 == 0 give aligned tap slices and the
    # zero-copy (no jnp.pad) path; other shapes are correct but slower.
    Cp = _round_up(C, LANE)                          # lane-dense features
    HB = _round_up(max(H, SUB), SUB)                 # halo block rows
    Rt = _pick_row_tile(R, HB, row_tile)             # rows per tile
    assert Rt % HB == 0
    Rpad = _round_up(R, Rt)
    grid = (Rpad // Rt,)
    rt_over_hb = Rt // HB

    rows_in = T_in * N               # == R + H
    rows_needed = Rpad + HB          # main blocks + last tile's halo block

    # ---- glue: flatten to (rows, features); pad only if unavoidable.
    x2 = x.reshape(rows_in, C)
    pad_rows = max(0, rows_needed - rows_in)
    pad_lanes = Cp - C
    if pad_rows or pad_lanes:
        # Fallback only (ragged N / C); this is a full extra HBM copy.
        x2 = jnp.pad(x2, ((0, pad_rows), (0, pad_lanes)))

    # ---- per-tap channel-mixing weights (K, Cp, Cp), block-diagonal over
    # width within the true C (feature index f = channel*width + w):
    # W[k, ci*width + w, co*width + v] = conv_w[co, ci, 0, k] * delta_{wv}
    wdt = matmul_dtype if matmul_dtype is not None else x.dtype
    wk = conv_w[:, :, 0, :].astype(jnp.float32)              # (co, ci, K)
    eye_w = jnp.eye(width, dtype=jnp.float32)
    w_taps = jnp.einsum('oik,wv->kiwov', wk, eye_w).reshape(K, C, C)
    if pad_lanes:
        w_taps = jnp.pad(w_taps, ((0, 0), (0, pad_lanes), (0, pad_lanes)))
    w_taps = w_taps.astype(wdt)

    # ---- conv bias / gamma / beta / lane mask packed into one (4, Cp) block.
    def _padc(v):
        return jnp.pad(v.astype(jnp.float32), (0, pad_lanes))
    params = jnp.stack([
        _padc(jnp.repeat(conv_b, width)),        # per-feature conv bias
        _padc(ln_w),
        _padc(ln_b),
        _padc(jnp.ones((C,), jnp.float32)),      # mask (only read if Cp != C)
    ])

    kernel = functools.partial(
        _tds_kernel, n=N, kw=K, inv_c=1.0 / C, eps=float(eps),
        use_mask=(Cp != C),
        cast=(None if (matmul_dtype is None or matmul_dtype == x.dtype)
              else matmul_dtype))

    itm = x.dtype.itemsize
    vmem_est = (2 * (Rt + HB) * Cp * itm                       # inputs (x2 blocks)
                + 2 * K * Cp * Cp * jnp.dtype(wdt).itemsize    # resident weights
                + 2 * 4 * Cp * 4                               # params
                + 2 * Rt * Cp * itm                            # output
                + Rt * Cp * 4)                                 # f32 acc scratch
    vmem_limit = int(min(64 * 1024 * 1024, max(32 * 1024 * 1024, 2 * vmem_est)))

    out2d = pl.pallas_call(
        kernel,
        out_shape=jax.ShapeDtypeStruct((Rpad, Cp), x.dtype),
        grid=grid,
        in_specs=[
            # main row block of the input window
            pl.BlockSpec((Rt, Cp), lambda i: (i, 0)),
            # (K-1)*N-row halo: the HB rows just past this tile's main block
            pl.BlockSpec((HB, Cp), lambda i: ((i + 1) * rt_over_hb, 0)),
            # constant-index blocks: fetched once, stay VMEM-resident
            pl.BlockSpec((K, Cp, Cp), lambda i: (0, 0, 0)),
            pl.BlockSpec((4, Cp), lambda i: (0, 0)),
        ],
        out_specs=pl.BlockSpec((Rt, Cp), lambda i: (i, 0)),
        scratch_shapes=[pltpu.VMEM((Rt, Cp), jnp.float32)],
        compiler_params=pltpu.CompilerParams(
            dimension_semantics=("parallel",),      # shard row tiles on v7x
            vmem_limit_bytes=vmem_limit,
        ),
    )(x2, x2, w_taps, params)

    return out2d[:R, :C].reshape(T_out, N, C)


def tds_conv2d_block_ref(x, conv_w, conv_b, ln_w, ln_b, *, channels, width,
                         kernel_width, eps=1e-5):
    """Pure-JAX reference mirroring the PyTorch forward exactly."""
    T_in, N, C = x.shape
    xr = jnp.moveaxis(x, 0, -1).reshape(N, channels, width, T_in)
    out = lax.conv_general_dilated(xr, conv_w, window_strides=(1, 1),
                                   padding='VALID',
                                   dimension_numbers=('NCHW', 'OIHW', 'NCHW'))
    out = out + conv_b[None, :, None, None]
    out = jnp.maximum(out, 0.0)
    T_out = out.shape[-1]
    out = jnp.moveaxis(out.reshape(N, C, T_out), -1, 0)   # (T_out, N, C)
    out = out + x[-T_out:]
    mean = out.mean(-1, keepdims=True)
    var = ((out - mean) ** 2).mean(-1, keepdims=True)
    return (out - mean) / jnp.sqrt(var + eps) * ln_w + ln_b


if __name__ == "__main__":
    # TPU-friendly small demo: C = channels*width = 128 (lane-dense, no pad),
    # N = 8 (sublane-aligned taps), R = T_out*N = 2048 rows -> 8 pipelined
    # grid steps at row_tile=256 (>= 4 steps per TensorCore on v7x).
    channels, width, kernel_width = 8, 16, 3
    C = channels * width                       # num_features = 128
    T_in, N = 258, 8                           # T_out = 256

    key = jax.random.PRNGKey(0)
    kx, kwt, kb, kg, kbeta = jax.random.split(key, 5)
    x = jax.random.normal(kx, (T_in, N, C), jnp.float32)

    # Deterministic synthetic parameters (Conv2d kaiming-uniform-style bound).
    fan_in = channels * 1 * kernel_width
    bound = float(1.0 / (fan_in ** 0.5))
    conv_w = jax.random.uniform(kwt, (channels, channels, 1, kernel_width),
                                jnp.float32, -bound, bound)
    conv_b = jax.random.uniform(kb, (channels,), jnp.float32, -bound, bound)
    ln_w = 1.0 + 0.1 * jax.random.normal(kg, (C,), jnp.float32)
    ln_b = 0.1 * jax.random.normal(kbeta, (C,), jnp.float32)

    out = tds_conv2d_block(x, conv_w, conv_b, ln_w, ln_b,
                           channels=channels, width=width,
                           kernel_width=kernel_width, row_tile=256)
    out = jax.block_until_ready(out)

    ref = tds_conv2d_block_ref(x, conv_w, conv_b, ln_w, ln_b,
                               channels=channels, width=width,
                               kernel_width=kernel_width)

    assert out.shape == (T_in - kernel_width + 1, N, C), out.shape
    assert jnp.allclose(out, ref, atol=1e-4, rtol=1e-4), \
        float(jnp.max(jnp.abs(out - ref)))
    print("KERNEL_OK")
</pallas_src>

<mosaic_0001>
module attributes {stable_mosaic.version = 11 : i64} {
  func.func @_tds_kernel(%arg0: i32, %arg1: memref<256x128xf32, #tpu.memory_space<vmem>>, %arg2: memref<16x128xf32, #tpu.memory_space<vmem>>, %arg3: memref<3x128x128xf32, #tpu.memory_space<vmem>>, %arg4: memref<4x128xf32, #tpu.memory_space<vmem>>, %arg5: memref<256x128xf32, #tpu.memory_space<vmem>>, %arg6: memref<256x128xf32, #tpu.memory_space<vmem>>) attributes {dimension_semantics = [#tpu.dimension_semantics<parallel>], iteration_bounds = array<i64: 8>, scalar_prefetch = 0 : i64, scratch_operands = 1 : i64, tpu.core_type = #tpu.core_type<tc>, window_params = [{transform_indices = @transform_0, window_bounds = array<i64: 256, 128>}, {transform_indices = @transform_1, window_bounds = array<i64: 16, 128>}, {pipeline_mode = #tpu.pipeline_mode<synchronous>, transform_indices = @transform_2, window_bounds = array<i64: 3, 128, 128>}, {pipeline_mode = #tpu.pipeline_mode<synchronous>, transform_indices = @transform_3, window_bounds = array<i64: 4, 128>}, {transform_indices = @transform_4, window_bounds = array<i64: 256, 128>}]} {
    %c0 = arith.constant 0 : index
    %c0_0 = arith.constant 0 : index
    %0 = vector.load %arg4[%c0, %c0_0] : memref<4x128xf32, #tpu.memory_space<vmem>>, vector<4x128xf32>
    %1 = vector.extract_strided_slice %0 {offsets = [0, 0], sizes = [1, 128], strides = [1, 1]} : vector<4x128xf32> to vector<1x128xf32>
    %2 = vector.extract_strided_slice %0 {offsets = [1, 0], sizes = [1, 128], strides = [1, 1]} : vector<4x128xf32> to vector<1x128xf32>
    %3 = vector.extract_strided_slice %0 {offsets = [2, 0], sizes = [1, 128], strides = [1, 1]} : vector<4x128xf32> to vector<1x128xf32>
    %c0_1 = arith.constant 0 : index
    %c0_2 = arith.constant 0 : index
    %4 = vector.load %arg1[%c0_1, %c0_2] : memref<256x128xf32, #tpu.memory_space<vmem>>, vector<256x128xf32>
    %c0_3 = arith.constant 0 : index
    %c0_4 = arith.constant 0 : index
    %c0_5 = arith.constant 0 : index
    %5 = vector.load %arg3[%c0_3, %c0_4, %c0_5] : memref<3x128x128xf32, #tpu.memory_space<vmem>>, vector<1x128x128xf32>
    %6 = vector.shape_cast %5 : vector<1x128x128xf32> to vector<128x128xf32>
    %cst = arith.constant dense<0.000000e+00> : vector<256x128xf32>
    %7 = tpu.matmul %4, %6, %cst {dimension_numbers = #tpu.dot_dimension_numbers<[1], [0], [0], [1], [0, 0, 1, 1], [], []>} : vector<256x128xf32>, vector<128x128xf32>, vector<256x128xf32> -> vector<256x128xf32>
    %8 = vector.broadcast %1 : vector<1x128xf32> to vector<256x128xf32>
    %9 = arith.addf %7, %8 : vector<256x128xf32>
    %c0_6 = arith.constant 0 : index
    %c0_7 = arith.constant 0 : index
    %10 = vector.load %arg6[%c0_6, %c0_7] : memref<256x128xf32, #tpu.memory_space<vmem>>, vector<256x128xf32>
    tpu.vector_store %arg6[%c0_6, %c0_7], %9 {strides = array<i32>} : memref<256x128xf32, #tpu.memory_space<vmem>>, vector<256x128xf32>,
    %c0_8 = arith.constant 0 : index
    %c0_9 = arith.constant 0 : index
    %11 = vector.load %arg6[%c0_8, %c0_9] : memref<256x128xf32, #tpu.memory_space<vmem>>, vector<248x128xf32>
    %c8 = arith.constant 8 : index
    %c0_10 = arith.constant 0 : index
    %12 = vector.load %arg1[%c8, %c0_10] : memref<256x128xf32, #tpu.memory_space<vmem>>, vector<248x128xf32>
    %c1 = arith.constant 1 : index
    %c0_11 = arith.constant 0 : index
    %c0_12 = arith.constant 0 : index
    %13 = vector.load %arg3[%c1, %c0_11, %c0_12] : memref<3x128x128xf32, #tpu.memory_space<vmem>>, vector<1x128x128xf32>
    %14 = vector.shape_cast %13 : vector<1x128x128xf32> to vector<128x128xf32>
    %cst_13 = arith.constant dense<0.000000e+00> : vector<248x128xf32>
    %15 = tpu.matmul %12, %14, %cst_13 {dimension_numbers = #tpu.dot_dimension_numbers<[1], [0], [0], [1], [0, 0, 1, 1], [], []>} : vector<248x128xf32>, vector<128x128xf32>, vector<248x128xf32> -> vector<248x128xf32>
    %16 = arith.addf %11, %15 : vector<248x128xf32>
    %c0_14 = arith.constant 0 : index
    %c0_15 = arith.constant 0 : index
    %17 = vector.load %arg6[%c0_14, %c0_15] : memref<256x128xf32, #tpu.memory_space<vmem>>, vector<248x128xf32>
    tpu.vector_store %arg6[%c0_14, %c0_15], %16 {strides = array<i32>} : memref<256x128xf32, #tpu.memory_space<vmem>>, vector<248x128xf32>,
    %c248 = arith.constant 248 : index
    %c0_16 = arith.constant 0 : index
    %18 = vector.load %arg6[%c248, %c0_16] : memref<256x128xf32, #tpu.memory_space<vmem>>, vector<8x128xf32>
    %c0_17 = arith.constant 0 : index
    %c0_18 = arith.constant 0 : index
    %19 = vector.load %arg2[%c0_17, %c0_18] : memref<16x128xf32, #tpu.memory_space<vmem>>, vector<8x128xf32>
    %c1_19 = arith.constant 1 : index
    %c0_20 = arith.constant 0 : index
    %c0_21 = arith.constant 0 : index
    %20 = vector.load %arg3[%c1_19, %c0_20, %c0_21] : memref<3x128x128xf32, #tpu.memory_space<vmem>>, vector<1x128x128xf32>
    %21 = vector.shape_cast %20 : vector<1x128x128xf32> to vector<128x128xf32>
    %cst_22 = arith.constant dense<0.000000e+00> : vector<8x128xf32>
    %22 = tpu.matmul %19, %21, %cst_22 {dimension_numbers = #tpu.dot_dimension_numbers<[1], [0], [0], [1], [0, 0, 1, 1], [], []>} : vector<8x128xf32>, vector<128x128xf32>, vector<8x128xf32> -> vector<8x128xf32>
    %23 = arith.addf %18, %22 : vector<8x128xf32>
    %c248_23 = arith.constant 248 : index
    %c0_24 = arith.constant 0 : index
    %24 = vector.load %arg6[%c248_23, %c0_24] : memref<256x128xf32, #tpu.memory_space<vmem>>, vector<8x128xf32>
    tpu.vector_store %arg6[%c248_23, %c0_24], %23 {strides = array<i32>} : memref<256x128xf32, #tpu.memory_space<vmem>>, vector<8x128xf32>,
    %c0_25 = arith.constant 0 : index
    %c0_26 = arith.constant 0 : index
    %25 = vector.load %arg6[%c0_25, %c0_26] : memref<256x128xf32, #tpu.memory_space<vmem>>, vector<240x128xf32>
    %c16 = arith.constant 16 : index
    %c0_27 = arith.constant 0 : index
    %26 = vector.load %arg1[%c16, %c0_27] : memref<256x128xf32, #tpu.memory_space<vmem>>, vector<240x128xf32>
    %c2 = arith.constant 2 : index
    %c0_28 = arith.constant 0 : index
    %c0_29 = arith.constant 0 : index
    %27 = vector.load %arg3[%c2, %c0_28, %c0_29] : memref<3x128x128xf32, #tpu.memory_space<vmem>>, vector<1x128x128xf32>
    %28 = vector.shape_cast %27 : vector<1x128x128xf32> to vector<128x128xf32>
    %cst_30 = arith.constant dense<0.000000e+00> : vector<240x128xf32>
    %29 = tpu.matmul %26, %28, %cst_30 {dimension_numbers = #tpu.dot_dimension_numbers<[1], [0], [0], [1], [0, 0, 1, 1], [], []>} : vector<240x128xf32>, vector<128x128xf32>, vector<240x128xf32> -> vector<240x128xf32>
    %30 = arith.addf %25, %29 : vector<240x128xf32>
    %c0_31 = arith.constant 0 : index
    %c0_32 = arith.constant 0 : index
    %31 = vector.load %arg6[%c0_31, %c0_32] : memref<256x128xf32, #tpu.memory_space<vmem>>, vector<240x128xf32>
    tpu.vector_store %arg6[%c0_31, %c0_32], %30 {strides = array<i32>} : memref<256x128xf32, #tpu.memory_space<vmem>>, vector<240x128xf32>,
    %c240 = arith.constant 240 : index
    %c0_33 = arith.constant 0 : index
    %32 = vector.load %arg6[%c240, %c0_33] : memref<256x128xf32, #tpu.memory_space<vmem>>, vector<16x128xf32>
    %c0_34 = arith.constant 0 : index
    %c0_35 = arith.constant 0 : index
    %33 = vector.load %arg2[%c0_34, %c0_35] : memref<16x128xf32, #tpu.memory_space<vmem>>, vector<16x128xf32>
    %c2_36 = arith.constant 2 : index
    %c0_37 = arith.constant 0 : index
    %c0_38 = arith.constant 0 : index
    %34 = vector.load %arg3[%c2_36, %c0_37, %c0_38] : memref<3x128x128xf32, #tpu.memory_space<vmem>>, vector<1x128x128xf32>
    %35 = vector.shape_cast %34 : vector<1x128x128xf32> to vector<128x128xf32>
    %cst_39 = arith.constant dense<0.000000e+00> : vector<16x128xf32>
    %36 = tpu.matmul %33, %35, %cst_39 {dimension_numbers = #tpu.dot_dimension_numbers<[1], [0], [0], [1], [0, 0, 1, 1], [], []>} : vector<16x128xf32>, vector<128x128xf32>, vector<16x128xf32> -> vector<16x128xf32>
    %37 = arith.addf %32, %36 : vector<16x128xf32>
    %c240_40 = arith.constant 240 : index
    %c0_41 = arith.constant 0 : index
    %38 = vector.load %arg6[%c240_40, %c0_41] : memref<256x128xf32, #tpu.memory_space<vmem>>, vector<16x128xf32>
    tpu.vector_store %arg6[%c240_40, %c0_41], %37 {strides = array<i32>} : memref<256x128xf32, #tpu.memory_space<vmem>>, vector<16x128xf32>,
    %c0_42 = arith.constant 0 : index
    %c0_43 = arith.constant 0 : index
    %39 = vector.load %arg6[%c0_42, %c0_43] : memref<256x128xf32, #tpu.memory_space<vmem>>, vector<240x128xf32>
    %cst_44 = arith.constant 0.000000e+00 : f32
    %40 = vector.broadcast %cst_44 : f32 to vector<240x128xf32>
    %41 = arith.maximumf %39, %40 : vector<240x128xf32>
    %c16_45 = arith.constant 16 : index
    %c0_46 = arith.constant 0 : index
    %42 = vector.load %arg1[%c16_45, %c0_46] : memref<256x128xf32, #tpu.memory_space<vmem>>, vector<240x128xf32>
    %43 = arith.addf %41, %42 : vector<240x128xf32>
    %c0_47 = arith.constant 0 : index
    %c0_48 = arith.constant 0 : index
    %44 = vector.load %arg6[%c0_47, %c0_48] : memref<256x128xf32, #tpu.memory_space<vmem>>, vector<240x128xf32>
    tpu.vector_store %arg6[%c0_47, %c0_48], %43 {strides = array<i32>} : memref<256x128xf32, #tpu.memory_space<vmem>>, vector<240x128xf32>,
    %c240_49 = arith.constant 240 : index
    %c0_50 = arith.constant 0 : index
    %45 = vector.load %arg6[%c240_49, %c0_50] : memref<256x128xf32, #tpu.memory_space<vmem>>, vector<16x128xf32>
    %cst_51 = arith.constant 0.000000e+00 : f32
    %46 = vector.broadcast %cst_51 : f32 to vector<16x128xf32>
    %47 = arith.maximumf %45, %46 : vector<16x128xf32>
    %c0_52 = arith.constant 0 : index
    %c0_53 = arith.constant 0 : index
    %48 = vector.load %arg2[%c0_52, %c0_53] : memref<16x128xf32, #tpu.memory_space<vmem>>, vector<16x128xf32>
    %49 = arith.addf %47, %48 : vector<16x128xf32>
    %c240_54 = arith.constant 240 : index
    %c0_55 = arith.constant 0 : index
    %50 = vector.load %arg6[%c240_54, %c0_55] : memref<256x128xf32, #tpu.memory_space<vmem>>, vector<16x128xf32>
    tpu.vector_store %arg6[%c240_54, %c0_55], %49 {strides = array<i32>} : memref<256x128xf32, #tpu.memory_space<vmem>>, vector<16x128xf32>,
    %c0_56 = arith.constant 0 : index
    %c0_57 = arith.constant 0 : index
    %51 = vector.load %arg6[%c0_56, %c0_57] : memref<256x128xf32, #tpu.memory_space<vmem>>, vector<256x128xf32>
    %cst_58 = arith.constant dense<0.000000e+00> : vector<256xf32>
    %52 = vector.multi_reduction <add>, %51, %cst_58 [1] : vector<256x128xf32> to vector<256xf32>
    %53 = vector.shape_cast %52 : vector<256xf32> to vector<256x1xf32>
    %54 = arith.mulf %51, %51 : vector<256x128xf32>
    %cst_59 = arith.constant dense<0.000000e+00> : vector<256xf32>
    %55 = vector.multi_reduction <add>, %54, %cst_59 [1] : vector<256x128xf32> to vector<256xf32>
    %56 = vector.shape_cast %55 : vector<256xf32> to vector<256x1xf32>
    %cst_60 = arith.constant 7.812500e-03 : f32
    %57 = vector.broadcast %cst_60 : f32 to vector<256x1xf32>
    %58 = arith.mulf %53, %57 : vector<256x1xf32>
    %cst_61 = arith.constant 7.812500e-03 : f32
    %59 = vector.broadcast %cst_61 : f32 to vector<256x1xf32>
    %60 = arith.mulf %56, %59 : vector<256x1xf32>
    %61 = arith.mulf %58, %58 : vector<256x1xf32>
    %62 = arith.subf %60, %61 : vector<256x1xf32>
    %cst_62 = arith.constant 9.99999974E-6 : f32
    %63 = vector.broadcast %cst_62 : f32 to vector<256x1xf32>
    %64 = arith.addf %62, %63 : vector<256x1xf32>
    %65 = math.rsqrt %64 : vector<256x1xf32>
    %66 = vector.broadcast %58 : vector<256x1xf32> to vector<256x128xf32>
    %67 = arith.subf %51, %66 : vector<256x128xf32>
    %68 = vector.broadcast %2 : vector<1x128xf32> to vector<256x128xf32>
    %69 = vector.broadcast %65 : vector<256x1xf32> to vector<256x128xf32>
    %70 = arith.mulf %68, %69 : vector<256x128xf32>
    %71 = arith.mulf %67, %70 : vector<256x128xf32>
    %72 = vector.broadcast %3 : vector<1x128xf32> to vector<256x128xf32>
    %73 = arith.addf %71, %72 : vector<256x128xf32>
    %c0_63 = arith.constant 0 : index
    %c0_64 = arith.constant 0 : index
    %74 = vector.load %arg5[%c0_63, %c0_64] : memref<256x128xf32, #tpu.memory_space<vmem>>, vector<256x128xf32>
    tpu.vector_store %arg5[%c0_63, %c0_64], %73 {strides = array<i32>} : memref<256x128xf32, #tpu.memory_space<vmem>>, vector<256x128xf32>,
    return
  }
  func.func @transform_0(%arg0: i32) -> (i32, i32) {
    %c0_i32 = arith.constant 0 : i32
    %c0_i32_0 = arith.constant 0 : i32
    return %arg0, %c0_i32 : i32, i32
  }
  func.func @transform_1(%arg0: i32) -> (i32, i32) {
    %c1_i32 = arith.constant 1 : i32
    %0 = arith.addi %arg0, %c1_i32 : i32
    %c16_i32 = arith.constant 16 : i32
    %1 = arith.muli %0, %c16_i32 : i32
    %c0_i32 = arith.constant 0 : i32
    %c0_i32_0 = arith.constant 0 : i32
    return %1, %c0_i32 : i32, i32
  }
  func.func @transform_2(%arg0: i32) -> (i32, i32, i32) {
    %c0_i32 = arith.constant 0 : i32
    %c0_i32_0 = arith.constant 0 : i32
    %c0_i32_1 = arith.constant 0 : i32
    %c0_i32_2 = arith.constant 0 : i32
    return %c0_i32, %c0_i32_0, %c0_i32_1 : i32, i32, i32
  }
  func.func @transform_3(%arg0: i32) -> (i32, i32) {
    %c0_i32 = arith.constant 0 : i32
    %c0_i32_0 = arith.constant 0 : i32
    %c0_i32_1 = arith.constant 0 : i32
    return %c0_i32, %c0_i32_0 : i32, i32
  }
  func.func @transform_4(%arg0: i32) -> (i32, i32) {
    %c0_i32 = arith.constant 0 : i32
    %c0_i32_0 = arith.constant 0 : i32
    return %arg0, %c0_i32 : i32, i32
  }
}

</mosaic_0001>

<llo_original>
// kernel: tpu_custom_call.1
$region0: #{tpu_custom_call.1}
  #allocation0 [shape = 'u32[]', space=smem, size = 0x4, offset = 0x4, fixed_abs, tag = 'smem constant byte address 0x4 - core index']
  #allocation1 [shape = 'u32[72,128]{1,0:T(1,128)}', space=vmem, size = 0x9000, scoped, tag = 'internal scratch']
  #allocation2 [shape = 'f32[256,128]{1,0:T(8,128)}', space=vmem, size = 0x20000, scoped, tag = 'scratch operand']
  %s0 = inlined_call_operand.hbm [shape: f32[2064,128], index: 0, kind: input, shape index: {}]
  %s1 = inlined_call_operand.hbm [shape: f32[2064,128], index: 1, kind: input, shape index: {}]
  %s2 = inlined_call_operand.hbm [shape: f32[3,128,128], index: 2, kind: input, shape index: {}]
  %s3 = inlined_call_operand.hbm [shape: f32[4,128], index: 3, kind: input, shape index: {}]
  %s4 = inlined_call_operand.hbm [shape: f32[2048,128], index: 4, kind: output, shape index: {}]
  %s5 = sld [smem:[#allocation0]]
  $region65: #{tpu_custom_call.1} parent=0
    _
  %s7 = ssub.s32 1, %s5
  %s8 = scalar_select 0, %s7, %s5
  $region1: #{tpu_custom_call.1} parent=0
    #allocation3 [shape = 'u8[262144]{0}', space=vmem, size = 0x40000, scoped, tag = 'input window, operand 0']
    #allocation4 [shape = 's32[2]{0}', space=sflag, size = 0x8, scoped, tag = 'scoped memory for tpu_custom_call.1']
    #allocation5 [shape = 's32[2]{0}', space=sflag, size = 0x8, scoped, tag = 'scoped memory for tpu_custom_call.1']
    #allocation6 [shape = 'u8[16384]{0}', space=vmem, size = 0x4000, scoped, tag = 'input window, operand 1']
    #allocation7 [shape = 's32[2]{0}', space=sflag, size = 0x8, scoped, tag = 'scoped memory for tpu_custom_call.1']
    #allocation8 [shape = 'u8[196608]{0}', space=vmem, size = 0x30000, scoped, tag = 'input window, operand 2, single buffered']
    #allocation9 [shape = 'u8[2048]{0}', space=vmem, size = 0x800, scoped, tag = 'input window, operand 3, single buffered']
    #allocation10 [shape = 's32[1]{0}', space=sflag, size = 0x4, scoped, tag = 'scoped memory for tpu_custom_call.1']
    #allocation11 [shape = 'u8[262144]{0}', space=vmem, size = 0x40000, scoped, tag = 'output window, operand 0']
    %9 = vsyncpa [#allocation4], 0
    %s10 = scalar_lea.sflag [#allocation4], 1
    %11 = vsyncpa %s10, 0
    %12 = vsyncpa [#allocation7], 0
    %s13 = scalar_lea.sflag [#allocation7], 1
    %14 = vsyncpa %s13, 0
    %15 = vsyncpa [#allocation10], 0
    %16 = vsyncpa [#allocation5], 0
    %s17 = scalar_lea.sflag [#allocation5], 1
    %18 = vsyncpa %s17, 0
    loop: start=0, step=1, limit=10
    $region2: #{tpu_custom_call.1} parent=1 // loop_pre_header
      _
    $region3: #{tpu_custom_call.1} parent=1 // loop_header
      %s20 = sphi 0, %s24
      %p21 = scmp.ge.s32.totalorder %s20, 10
      %s30 = sphi 0, %s32
      %s33 = sphi 0, %s30
      %s34 = sphi 0, %s33
      %s50 = sphi 0, %s34
      %s60 = sphi 0, %s62
      %s63 = sphi 0, %s60
      %s64 = sphi 0, %s63
      %s80 = sphi 0, %s64
      %s84 = sphi 0, %s84
      %s86 = sphi 0, %s84
      %s87 = sphi 0, %s86
      %s101 = sphi 0, %s87
      %s105 = sphi 0, %s105
      %s107 = sphi 0, %s105
      %s108 = sphi 0, %s107
      %s122 = sphi 0, %s108
      %s128 = sphi 0, %s130
      %s131 = sphi 0, %s128
      %s132 = sphi 0, %s131
      %s148 = sphi 0, %s132
    $region4: #{tpu_custom_call.1} parent=1 // loop_header_branch
      %23 = sbr.rel (%p21) target = $region8
    $region5: #{tpu_custom_call.1} parent=1 // loop_body
      %s25 = ssub.s32 %s20, 1
      %s26 = ssub.s32 %s20, 2
      %s27 = sadd.s32 %s20, 1
      %s28 = ssub.s32 %s20, %s27
      %p29 = scmp.eq.s32.totalorder %s28, 0
      %s31 = sadd.s32 %s30, 1
      %s32 = scalar_select %p29, %s30, %s31
      %p35 = pneg %p29
      %p36 = scmp.eq.s32.totalorder %s20, 7
      %p37 = por %p35, %p36
      %p38 = scmp.ne.s32.totalorder %s30, %s33
      %p39 = scmp.eq.s32.totalorder %s20, 0
      %p40 = por %p38, %p39
      %p41 = scmp.ne.s32.totalorder %s30, %s33
      %p42 = scmp.eq.s32.totalorder %s25, 7
      %p43 = por %p41, %p42
      %p44 = scmp.ne.s32.totalorder %s33, %s34
      %p45 = scmp.eq.s32.totalorder %s25, 0
      %p46 = por %p44, %p45
      %p47 = scmp.ne.s32.totalorder %s33, %s34
      %p48 = scmp.eq.s32.totalorder %s26, 7
      %p49 = por %p47, %p48
      %p51 = scmp.ne.s32.totalorder %s34, %s50
      %p52 = scmp.eq.s32.totalorder %s26, 0
      %p53 = por %p51, %p52
      %s54 = sadd.s32 %s20, 1
      %s55 = smul.u32 %s54, 16
      %s56 = sadd.s32 %s27, 1
      %s57 = smul.u32 %s56, 16
      %s58 = ssub.s32 %s55, %s57
      %p59 = scmp.eq.s32.totalorder %s58, 0
      %s61 = sadd.s32 %s60, 1
      %s62 = scalar_select %p59, %s60, %s61
      %p65 = pneg %p59
      %p66 = scmp.eq.s32.totalorder %s20, 7
      %p67 = por %p65, %p66
      %p68 = scmp.ne.s32.totalorder %s60, %s63
      %p69 = scmp.eq.s32.totalorder %s20, 0
      %p70 = por %p68, %p69
      %p71 = scmp.ne.s32.totalorder %s60, %s63
      %p72 = scmp.eq.s32.totalorder %s25, 7
      %p73 = por %p71, %p72
      %p74 = scmp.ne.s32.totalorder %s63, %s64
      %p75 = scmp.eq.s32.totalorder %s25, 0
      %p76 = por %p74, %p75
      %p77 = scmp.ne.s32.totalorder %s63, %s64
      %p78 = scmp.eq.s32.totalorder %s26, 7
      %p79 = por %p77, %p78
      %p81 = scmp.ne.s32.totalorder %s64, %s80
      %p82 = scmp.eq.s32.totalorder %s26, 0
      %p83 = por %p81, %p82
      %s85 = sadd.s32 %s84, 1
      %p88 = scmp.eq.s32.totalorder %s20, 7
      %p89 = scmp.ne.s32.totalorder %s84, %s86
      %p90 = scmp.eq.s32.totalorder %s20, 0
      %p91 = por %p89, %p90
      %p92 = scmp.ne.s32.totalorder %s84, %s86
      %p93 = scmp.eq.s32.totalorder %s25, 7
      %p94 = por %p92, %p93
      %p95 = scmp.ne.s32.totalorder %s86, %s87
      %p96 = scmp.eq.s32.totalorder %s25, 0
      %p97 = por %p95, %p96
      %p98 = scmp.ne.s32.totalorder %s86, %s87
      %p99 = scmp.eq.s32.totalorder %s26, 7
      %p100 = por %p98, %p99
      %p102 = scmp.ne.s32.totalorder %s87, %s101
      %p103 = scmp.eq.s32.totalorder %s26, 0
      %p104 = por %p102, %p103
      %s106 = sadd.s32 %s105, 1
      %p109 = scmp.eq.s32.totalorder %s20, 7
      %p110 = scmp.ne.s32.totalorder %s105, %s107
      %p111 = scmp.eq.s32.totalorder %s20, 0
      %p112 = por %p110, %p111
      %p113 = scmp.ne.s32.totalorder %s105, %s107
      %p114 = scmp.eq.s32.totalorder %s25, 7
      %p115 = por %p113, %p114
      %p116 = scmp.ne.s32.totalorder %s107, %s108
      %p117 = scmp.eq.s32.totalorder %s25, 0
      %p118 = por %p116, %p117
      %p119 = scmp.ne.s32.totalorder %s107, %s108
      %p120 = scmp.eq.s32.totalorder %s26, 7
      %p121 = por %p119, %p120
      %p123 = scmp.ne.s32.totalorder %s108, %s122
      %p124 = scmp.eq.s32.totalorder %s26, 0
      %p125 = por %p123, %p124
      %s126 = ssub.s32 %s20, %s27
      %p127 = scmp.eq.s32.totalorder %s126, 0
      %s129 = sadd.s32 %s128, 1
      %s130 = scalar_select %p127, %s128, %s129
      %p133 = pneg %p127
      %p134 = scmp.eq.s32.totalorder %s20, 7
      %p135 = por %p133, %p134
      %p136 = scmp.ne.s32.totalorder %s128, %s131
      %p137 = scmp.eq.s32.totalorder %s20, 0
      %p138 = por %p136, %p137
      %p139 = scmp.ne.s32.totalorder %s128, %s131
      %p140 = scmp.eq.s32.totalorder %s25, 7
      %p141 = por %p139, %p140
      %p142 = scmp.ne.s32.totalorder %s131, %s132
      %p143 = scmp.eq.s32.totalorder %s25, 0
      %p144 = por %p142, %p143
      %p145 = scmp.ne.s32.totalorder %s131, %s132
      %p146 = scmp.eq.s32.totalorder %s26, 7
      %p147 = por %p145, %p146
      %p149 = scmp.ne.s32.totalorder %s132, %s148
      %p150 = scmp.eq.s32.totalorder %s26, 0
      %p151 = por %p149, %p150
      %p152 = scmp.le.s32.totalorder 1, %s20
      %p153 = scmp.lt.s32.totalorder %s20, 9
      %p154 = pnand %p152, %p153
      %p155 = pneg %p154
      // Predicated region
      $region9: #{tpu_custom_call.1} parent=5 // pred_check
        _
      $region10: #{tpu_custom_call.1} parent=5 // pred_check_branch
        %157 = sbr.rel (%p154) target = $region12
      $region11: #{tpu_custom_call.1} parent=5 // pred_region
        %s158 = ssub.s32 %s20, 1
        // Predicated region
        $region13: #{tpu_custom_call.1} parent=11 // pred_check
          %p159 = pneg %p97
        $region14: #{tpu_custom_call.1} parent=11 // pred_check_branch
          %161 = sbr.rel (%p159) target = $region16
        $region15: #{tpu_custom_call.1} parent=11 // pred_region
          %163 = vsyncadd [#allocation7], 0
          %s164 = sshll.u32 %s2, 4
          %s165 = int_to_ptr.hbm [resolvable:$true] %s164
          %s166 = sshll.u32 [#allocation8], 4
          %s167 = int_to_ptr.vmem [resolvable:$true] %s166
          %172 = dma.hbm_to_vmem [thread:$0]  %s165, 6144, %s167, [#allocation7], 128, 128, 8
        $region16: #{tpu_custom_call.1} parent=11 // pred_fallthru
          _
        // Predicated region
        $region17: #{tpu_custom_call.1} parent=11 // pred_check
          %p173 = pneg %p118
        $region18: #{tpu_custom_call.1} parent=11 // pred_check_branch
          %175 = sbr.rel (%p173) target = $region20
        $region19: #{tpu_custom_call.1} parent=11 // pred_region
          %177 = vsyncadd [#allocation10], 0
          %s179 = sshll.u32 %s3, 4
          %s180 = int_to_ptr.hbm [resolvable:$true] %s179
          %s181 = sshll.u32 [#allocation9], 4
          %s182 = int_to_ptr.vmem [resolvable:$true] %s181
          %184 = dma.hbm_to_vmem [thread:$0]  %s180, 64, %s182, [#allocation10]
        $region20: #{tpu_custom_call.1} parent=11 // pred_fallthru
          _
      $region12: #{tpu_custom_call.1} parent=5 // pred_fallthru
        _
      %p185 = scmp.lt.s32.totalorder %s20, 8
      // Predicated region
      $region21: #{tpu_custom_call.1} parent=5 // pred_check
        %p186 = pneg %p185
      $region22: #{tpu_custom_call.1} parent=5 // pred_check_branch
        %188 = sbr.rel (%p186) target = $region24
      $region23: #{tpu_custom_call.1} parent=5 // pred_region
        // Predicated region
        $region25: #{tpu_custom_call.1} parent=23 // pred_check
          %p189 = pneg %p40
        $region26: #{tpu_custom_call.1} parent=23 // pred_check_branch
          %191 = sbr.rel (%p189) target = $region28
        $region27: #{tpu_custom_call.1} parent=23 // pred_region
          %s192 = sand.u32 %s30, 1
          %s193 = scalar_lea.sflag [#allocation4], %s192
          %s194 = sand.u32 %s30, 1
          %s195 = smul.addr %s194, 256
          %s196 = scalar_lea.vmem [#allocation3], %s195
          %s197 = smul.u32 32, %s20
          %s198 = ssub.s32 258, %s197
          %p199 = scmp.lt.s32.totalorder %s198, 32
          %s200 = scalar_select %p199, %s198, 32
          %s201 = smul.u32 8, %s200
          %s202 = ssub.s32 256, %s201
          %s203 = sshll.u32 %s202, 4
          %204 = vsyncadd %s193, %s203
          %p205 = scmp.ne.s32.totalorder 0, %s201
          %s206 = smul.addr %s197, 8
          %s207 = scalar_lea.hbm %s0, %s206
          %s208 = smul.u32 8, %s200
          %s209 = sshll.u32 %s207, 4
          %s210 = int_to_ptr.hbm [resolvable:$true] %s209
          %s211 = sshll.u32 %s196, 4
          %s212 = int_to_ptr.vmem [resolvable:$true] %s211
          %s213 = sshll.u32 %s208, 4
          %217 = dma.hbm_to_vmem [thread:$0]  (%p205), %s210, %s213, %s212, %s193, 128, 128, 8
        $region28: #{tpu_custom_call.1} parent=23 // pred_fallthru
          _
        // Predicated region
        $region29: #{tpu_custom_call.1} parent=23 // pred_check
          %p218 = pneg %p70
        $region30: #{tpu_custom_call.1} parent=23 // pred_check_branch
          %220 = sbr.rel (%p218) target = $region32
        $region31: #{tpu_custom_call.1} parent=23 // pred_region
          %s221 = sand.u32 %s20, 1
          %s222 = scalar_lea.sflag [#allocation7], %s221
          %s223 = sand.u32 %s60, 1
          %s224 = smul.addr %s223, 16
          %s225 = scalar_lea.vmem [#allocation6], %s224
          %s226 = sadd.s32 %s20, 1
          %s227 = smul.u32 %s226, 16
          %s228 = smul.u32 2, %s227
          %230 = vsyncadd %s222, 0
          %s231 = smul.addr %s228, 8
          %s232 = scalar_lea.hbm %s1, %s231
          %s233 = sshll.u32 %s232, 4
          %s234 = int_to_ptr.hbm [resolvable:$true] %s233
          %s235 = sshll.u32 %s225, 4
          %s236 = int_to_ptr.vmem [resolvable:$true] %s235
          %241 = dma.hbm_to_vmem [thread:$0]  %s234, 256, %s236, %s222, 128, 128, 8
        $region32: #{tpu_custom_call.1} parent=23 // pred_fallthru
          _
      $region24: #{tpu_custom_call.1} parent=5 // pred_fallthru
        _
      %p242 = scmp.le.s32.totalorder 1, %s20
      %p243 = scmp.lt.s32.totalorder %s20, 9
      %p244 = pnand %p242, %p243
      %p245 = pneg %p244
      // Predicated region
      $region33: #{tpu_custom_call.1} parent=5 // pred_check
        _
      $region34: #{tpu_custom_call.1} parent=5 // pred_check_branch
        %247 = sbr.rel (%p244) target = $region36
      $region35: #{tpu_custom_call.1} parent=5 // pred_region
        %s248 = ssub.s32 %s20, 1
        %s249 = sand.u32 %s33, 1
        %s250 = scalar_lea.sflag [#allocation4], %s249
        %s251 = sand.u32 %s33, 1
        %s252 = smul.addr %s251, 256
        %s253 = scalar_lea.vmem [#allocation3], %s252
        // Predicated region
        $region37: #{tpu_custom_call.1} parent=35 // pred_check
          %p254 = pneg %p46
        $region38: #{tpu_custom_call.1} parent=35 // pred_check_branch
          %256 = sbr.rel (%p254) target = $region40
        $region39: #{tpu_custom_call.1} parent=35 // pred_region
          %258 = dma.done %s250, 4096
        $region40: #{tpu_custom_call.1} parent=35 // pred_fallthru
          _
        %s259 = sand.u32 %s25, 1
        %s260 = scalar_lea.sflag [#allocation7], %s259
        %s261 = sand.u32 %s63, 1
        %s262 = smul.addr %s261, 16
        %s263 = scalar_lea.vmem [#allocation6], %s262
        // Predicated region
        $region41: #{tpu_custom_call.1} parent=35 // pred_check
          %p264 = pneg %p76
        $region42: #{tpu_custom_call.1} parent=35 // pred_check_branch
          %266 = sbr.rel (%p264) target = $region44
        $region43: #{tpu_custom_call.1} parent=35 // pred_region
          %268 = dma.done %s260, 256
        $region44: #{tpu_custom_call.1} parent=35 // pred_fallthru
          _
        // Predicated region
        $region45: #{tpu_custom_call.1} parent=35 // pred_check
          %p269 = pneg %p97
        $region46: #{tpu_custom_call.1} parent=35 // pred_check_branch
          %271 = sbr.rel (%p269) target = $region48
        $region47: #{tpu_custom_call.1} parent=35 // pred_region
          %273 = dma.done [#allocation7], 6144
        $region48: #{tpu_custom_call.1} parent=35 // pred_fallthru
          _
        // Predicated region
        $region49: #{tpu_custom_call.1} parent=35 // pred_check
          %p274 = pneg %p118
        $region50: #{tpu_custom_call.1} parent=35 // pred_check_branch
          %276 = sbr.rel (%p274) target = $region52
        $region51: #{tpu_custom_call.1} parent=35 // pred_region
          %278 = dma.done [#allocation10], 64
        $region52: #{tpu_custom_call.1} parent=35 // pred_fallthru
          _
        %s279 = sand.u32 %s33, 1
        %s280 = scalar_lea.sflag [#allocation4], %s279
        %s281 = sand.u32 %s33, 1
        %s282 = smul.addr %s281, 256
        %s283 = scalar_lea.vmem [#allocation3], %s282
        %p284 = pneg %p46
        %p285 = pneg %p43
        %s286 = sand.u32 %s25, 1
        %s287 = scalar_lea.sflag [#allocation7], %s286
        %s288 = sand.u32 %s63, 1
        %s289 = smul.addr %s288, 16
        %s290 = scalar_lea.vmem [#allocation6], %s289
        %p291 = pneg %p76
        %p292 = pneg %p73
        %p293 = pneg %p97
        %p294 = pneg %p94
        %p295 = pneg %p118
        %p296 = pneg %p115
        %p297 = pneg %p144
        %p298 = pneg %p141
        %s299 = sand.u32 %s131, 1
        %s300 = scalar_lea.sflag [#allocation5], %s299
        %s301 = sand.u32 %s131, 1
        %s302 = smul.addr %s301, 256
        %s303 = scalar_lea.vmem [#allocation11], %s302
        %s304 = smul.u32 32, %s25
        %s305 = ssub.s32 258, %s304
        %p306 = scmp.lt.s32.totalorder %s305, 32
        %s307 = scalar_select %p306, %s305, 32
        %s308 = smul.u32 8, %s307
        %s309 = sadd.s32 %s25, 1
        %s310 = smul.u32 %s309, 16
        %s311 = smul.u32 2, %s310
        %s312 = smul.u32 32, %s25
        %v313 = vld [vmem:[#allocation9] sm:$0xf]
        %v314 = vld [vmem:[%s253] sm:$0xff]
        %v315 = vld [vmem:[%s253 + $0x8] sm:$0xff]
        %v316 = vld [vmem:[%s253 + $0x10] sm:$0xff]
        %v317 = vld [vmem:[%s253 + $0x18] sm:$0xff]
        %v318 = vld [vmem:[%s253 + $0x20] sm:$0xff]
        %v319 = vld [vmem:[%s253 + $0x28] sm:$0xff]
        %v320 = vld [vmem:[%s253 + $0x30] sm:$0xff]
        %v321 = vld [vmem:[%s253 + $0x38] sm:$0xff]
        %v322 = vld [vmem:[%s253 + $0x40] sm:$0xff]
        %v323 = vld [vmem:[%s253 + $0x48] sm:$0xff]
        %v324 = vld [vmem:[%s253 + $0x50] sm:$0xff]
        %v325 = vld [vmem:[%s253 + $0x58] sm:$0xff]
        %v326 = vld [vmem:[%s253 + $0x60] sm:$0xff]
        %v327 = vld [vmem:[%s253 + $0x68] sm:$0xff]
        %v328 = vld [vmem:[%s253 + $0x70] sm:$0xff]
        %v329 = vld [vmem:[%s253 + $0x78] sm:$0xff]
        %v330 = vld [vmem:[%s253 + $0x80] sm:$0xff]
        %v331 = vld [vmem:[%s253 + $0x88] sm:$0xff]
        %v332 = vld [vmem:[%s253 + $0x90] sm:$0xff]
        %v333 = vld [vmem:[%s253 + $0x98] sm:$0xff]
        %v334 = vld [vmem:[%s253 + $0xa0] sm:$0xff]
        %v335 = vld [vmem:[%s253 + $0xa8] sm:$0xff]
        %v336 = vld [vmem:[%s253 + $0xb0] sm:$0xff]
        %v337 = vld [vmem:[%s253 + $0xb8] sm:$0xff]
        %v338 = vld [vmem:[%s253 + $0xc0] sm:$0xff]
        %v339 = vld [vmem:[%s253 + $0xc8] sm:$0xff]
        %v340 = vld [vmem:[%s253 + $0xd0] sm:$0xff]
        %v341 = vld [vmem:[%s253 + $0xd8] sm:$0xff]
        %v342 = vld [vmem:[%s253 + $0xe0] sm:$0xff]
        %v343 = vld [vmem:[%s253 + $0xe8] sm:$0xff]
        %v344 = vld [vmem:[%s253 + $0xf0] sm:$0xff]
        %v345 = vld [vmem:[%s253 + $0xf8] sm:$0xff]
        %v346 = vld [vmem:[#allocation8] sm:$0xff]
        %v347 = vld [vmem:[#allocation8 + $0x8] sm:$0xff]
        %v348 = vld [vmem:[#allocation8 + $0x10] sm:$0xff]
        %v349 = vld [vmem:[#allocation8 + $0x18] sm:$0xff]
        %v350 = vld [vmem:[#allocation8 + $0x20] sm:$0xff]
        %v351 = vld [vmem:[#allocation8 + $0x28] sm:$0xff]
        %v352 = vld [vmem:[#allocation8 + $0x30] sm:$0xff]
        %v353 = vld [vmem:[#allocation8 + $0x38] sm:$0xff]
        %v354 = vld [vmem:[#allocation8 + $0x40] sm:$0xff]
        %v355 = vld [vmem:[#allocation8 + $0x48] sm:$0xff]
        %v356 = vld [vmem:[#allocation8 + $0x50] sm:$0xff]
        %v357 = vld [vmem:[#allocation8 + $0x58] sm:$0xff]
        %v358 = vld [vmem:[#allocation8 + $0x60] sm:$0xff]
        %v359 = vld [vmem:[#allocation8 + $0x68] sm:$0xff]
        %v360 = vld [vmem:[#allocation8 + $0x70] sm:$0xff]
        %v361 = vld [vmem:[#allocation8 + $0x78] sm:$0xff]
        %v362 = vperm.slane %v313, 0
        %363 = vmatpush.msra.mxu0 %v361
        %364 = vmatpush.msra.mxu0 %v360
        %365 = vmatpush.msra.mxu0 %v359
        %366 = vmatpush.msra.mxu0 %v358
        %367 = vmatpush.msra.mxu0 %v357
        %368 = vmatpush.msra.mxu0 %v356
        %369 = vmatpush.msra.mxu0 %v355
        %370 = vmatpush.msra.mxu0 %v354
        %371 = vmatpush.msra.mxu0 %v353
        %372 = vmatpush.msra.mxu0 %v352
        %373 = vmatpush.msra.mxu0 %v351
        %374 = vmatpush.msra.mxu0 %v350
        %375 = vmatpush.msra.mxu0 %v349
        %376 = vmatpush.msra.mxu0 %v348
        %377 = vmatpush.msra.mxu0 %v347
        %378 = vmatpush.msra.mxu0 %v346
        %379 = vmatmul.f32.gmra.mxu0 %v314
        %v380 = vpop.f32.mrf.mxu0
        %v381 = vadd.f32 %v362, %v380
        %382 = vmatmul.f32.gmra.mxu0 %v315
        %v383 = vpop.f32.mrf.mxu0
        %v384 = vadd.f32 %v362, %v383
        %385 = vmatmul.f32.gmra.mxu0 %v316
        %v386 = vpop.f32.mrf.mxu0
        %v387 = vadd.f32 %v362, %v386
        %388 = vmatmul.f32.gmra.mxu0 %v317
        %v389 = vpop.f32.mrf.mxu0
        %v390 = vadd.f32 %v362, %v389
        %391 = vmatmul.f32.gmra.mxu0 %v318
        %v392 = vpop.f32.mrf.mxu0
        %v393 = vadd.f32 %v362, %v392
        %394 = vmatmul.f32.gmra.mxu0 %v319
        %v395 = vpop.f32.mrf.mxu0
        %v396 = vadd.f32 %v362, %v395
        %397 = vmatmul.f32.gmra.mxu0 %v320
        %v398 = vpop.f32.mrf.mxu0
        %v399 = vadd.f32 %v362, %v398
        %400 = vmatmul.f32.gmra.mxu0 %v321
        %v401 = vpop.f32.mrf.mxu0
        %v402 = vadd.f32 %v362, %v401
        %403 = vmatmul.f32.gmra.mxu0 %v322
        %v404 = vpop.f32.mrf.mxu0
        %v405 = vadd.f32 %v362, %v404
        %406 = vmatmul.f32.gmra.mxu0 %v323
        %v407 = vpop.f32.mrf.mxu0
        %v408 = vadd.f32 %v362, %v407
        %409 = vmatmul.f32.gmra.mxu0 %v324
        %v410 = vpop.f32.mrf.mxu0
        %v411 = vadd.f32 %v362, %v410
        %412 = vmatmul.f32.gmra.mxu0 %v325
        %v413 = vpop.f32.mrf.mxu0
        %v414 = vadd.f32 %v362, %v413
        %415 = vmatmul.f32.gmra.mxu0 %v326
        %v416 = vpop.f32.mrf.mxu0
        %v417 = vadd.f32 %v362, %v416
        %418 = vmatmul.f32.gmra.mxu0 %v327
        %v419 = vpop.f32.mrf.mxu0
        %v420 = vadd.f32 %v362, %v419
        %421 = vmatmul.f32.gmra.mxu0 %v328
        %v422 = vpop.f32.mrf.mxu0
        %v423 = vadd.f32 %v362, %v422
        %424 = vmatmul.f32.gmra.mxu0 %v329
        %v425 = vpop.f32.mrf.mxu0
        %v426 = vadd.f32 %v362, %v425
        %427 = vmatmul.f32.gmra.mxu0 %v330
        %v428 = vpop.f32.mrf.mxu0
        %v429 = vadd.f32 %v362, %v428
        %430 = vmatmul.f32.gmra.mxu0 %v331
        %v431 = vpop.f32.mrf.mxu0
        %v432 = vadd.f32 %v362, %v431
        %433 = vmatmul.f32.gmra.mxu0 %v332
        %v434 = vpop.f32.mrf.mxu0
        %v435 = vadd.f32 %v362, %v434
        %436 = vmatmul.f32.gmra.mxu0 %v333
        %v437 = vpop.f32.mrf.mxu0
        %v438 = vadd.f32 %v362, %v437
        %439 = vmatmul.f32.gmra.mxu0 %v334
        %v440 = vpop.f32.mrf.mxu0
        %v441 = vadd.f32 %v362, %v440
        %442 = vmatmul.f32.gmra.mxu0 %v335
        %v443 = vpop.f32.mrf.mxu0
        %v444 = vadd.f32 %v362, %v443
        %445 = vmatmul.f32.gmra.mxu0 %v336
        %v446 = vpop.f32.mrf.mxu0
        %v447 = vadd.f32 %v362, %v446
        %448 = vmatmul.f32.gmra.mxu0 %v337
        %v449 = vpop.f32.mrf.mxu0
        %v450 = vadd.f32 %v362, %v449
        %451 = vmatmul.f32.gmra.mxu0 %v338
        %v452 = vpop.f32.mrf.mxu0
        %v453 = vadd.f32 %v362, %v452
        %454 = vmatmul.f32.gmra.mxu0 %v339
        %v455 = vpop.f32.mrf.mxu0
        %v456 = vadd.f32 %v362, %v455
        %457 = vmatmul.f32.gmra.mxu0 %v340
        %v458 = vpop.f32.mrf.mxu0
        %v459 = vadd.f32 %v362, %v458
        %460 = vmatmul.f32.gmra.mxu0 %v341
        %v461 = vpop.f32.mrf.mxu0
        %v462 = vadd.f32 %v362, %v461
        %463 = vmatmul.f32.gmra.mxu0 %v342
        %v464 = vpop.f32.mrf.mxu0
        %v465 = vadd.f32 %v362, %v464
        %466 = vmatmul.f32.gmra.mxu0 %v343
        %v467 = vpop.f32.mrf.mxu0
        %v468 = vadd.f32 %v362, %v467
        %469 = vmatmul.f32.gmra.mxu0 %v344
        %v470 = vpop.f32.mrf.mxu0
        %v471 = vadd.f32 %v362, %v470
        %472 = vmatmul.f32.gmra.mxu0 %v345
        %v473 = vpop.f32.mrf.mxu0
        %v474 = vadd.f32 %v362, %v473
        %475 = vdwg.mxu0
        %476 = vst [vmem:[#allocation2] sm:$0xff] %v381
        %477 = vst [vmem:[#allocation2 + $0x8] sm:$0xff] %v384
        %478 = vst [vmem:[#allocation2 + $0x10] sm:$0xff] %v387
        %479 = vst [vmem:[#allocation2 + $0x18] sm:$0xff] %v390
        %480 = vst [vmem:[#allocation2 + $0x20] sm:$0xff] %v393
        %481 = vst [vmem:[#allocation2 + $0x28] sm:$0xff] %v396
        %482 = vst [vmem:[#allocation2 + $0x30] sm:$0xff] %v399
        %483 = vst [vmem:[#allocation2 + $0x38] sm:$0xff] %v402
        %484 = vst [vmem:[#allocation2 + $0x40] sm:$0xff] %v405
        %485 = vst [vmem:[#allocation2 + $0x48] sm:$0xff] %v408
        %486 = vst [vmem:[#allocation2 + $0x50] sm:$0xff] %v411
        %487 = vst [vmem:[#allocation2 + $0x58] sm:$0xff] %v414
        %488 = vst [vmem:[#allocation2 + $0x60] sm:$0xff] %v417
        %489 = vst [vmem:[#allocation2 + $0x68] sm:$0xff] %v420
        %490 = vst [vmem:[#allocation2 + $0x70] sm:$0xff] %v423
        %491 = vst [vmem:[#allocation2 + $0x78] sm:$0xff] %v426
        %492 = vst [vmem:[#allocation2 + $0x80] sm:$0xff] %v429
        %493 = vst [vmem:[#allocation2 + $0x88] sm:$0xff] %v432
        %494 = vst [vmem:[#allocation2 + $0x90] sm:$0xff] %v435
        %495 = vst [vmem:[#allocation2 + $0x98] sm:$0xff] %v438
        %496 = vst [vmem:[#allocation2 + $0xa0] sm:$0xff] %v441
        %497 = vst [vmem:[#allocation2 + $0xa8] sm:$0xff] %v444
        %498 = vst [vmem:[#allocation2 + $0xb0] sm:$0xff] %v447
        %499 = vst [vmem:[#allocation2 + $0xb8] sm:$0xff] %v450
        %500 = vst [vmem:[#allocation2 + $0xc0] sm:$0xff] %v453
        %501 = vst [vmem:[#allocation2 + $0xc8] sm:$0xff] %v456
        %502 = vst [vmem:[#allocation2 + $0xd0] sm:$0xff] %v459
        %503 = vst [vmem:[#allocation2 + $0xd8] sm:$0xff] %v462
        %504 = vst [vmem:[#allocation2 + $0xe0] sm:$0xff] %v465
        %505 = vst [vmem:[#allocation2 + $0xe8] sm:$0xff] %v468
        %506 = vst [vmem:[#allocation2 + $0xf0] sm:$0xff] %v471
        %507 = vst [vmem:[#allocation2 + $0xf8] sm:$0xff] %v474
        %v508 = vld [vmem:[#allocation2] sm:$0xff]
        %v509 = vld [vmem:[#allocation2 + $0x8] sm:$0xff]
        %v510 = vld [vmem:[#allocation2 + $0x10] sm:$0xff]
        %v511 = vld [vmem:[#allocation2 + $0x18] sm:$0xff]
        %v512 = vld [vmem:[#allocation2 + $0x20] sm:$0xff]
        %v513 = vld [vmem:[#allocation2 + $0x28] sm:$0xff]
        %v514 = vld [vmem:[#allocation2 + $0x30] sm:$0xff]
        %v515 = vld [vmem:[#allocation2 + $0x38] sm:$0xff]
        %v516 = vld [vmem:[#allocation2 + $0x40] sm:$0xff]
        %v517 = vld [vmem:[#allocation2 + $0x48] sm:$0xff]
        %v518 = vld [vmem:[#allocation2 + $0x50] sm:$0xff]
        %v519 = vld [vmem:[#allocation2 + $0x58] sm:$0xff]
        %v520 = vld [vmem:[#allocation2 + $0x60] sm:$0xff]
        %v521 = vld [vmem:[#allocation2 + $0x68] sm:$0xff]
        %v522 = vld [vmem:[#allocation2 + $0x70] sm:$0xff]
        %v523 = vld [vmem:[#allocation2 + $0x78] sm:$0xff]
        %v524 = vld [vmem:[#allocation2 + $0x80] sm:$0xff]
        %v525 = vld [vmem:[#allocation2 + $0x88] sm:$0xff]
        %v526 = vld [vmem:[#allocation2 + $0x90] sm:$0xff]
        %v527 = vld [vmem:[#allocation2 + $0x98] sm:$0xff]
        %v528 = vld [vmem:[#allocation2 + $0xa0] sm:$0xff]
        %v529 = vld [vmem:[#allocation2 + $0xa8] sm:$0xff]
        %v530 = vld [vmem:[#allocation2 + $0xb0] sm:$0xff]
        %v531 = vld [vmem:[#allocation2 + $0xb8] sm:$0xff]
        %v532 = vld [vmem:[#allocation2 + $0xc0] sm:$0xff]
        %v533 = vld [vmem:[#allocation2 + $0xc8] sm:$0xff]
        %v534 = vld [vmem:[#allocation2 + $0xd0] sm:$0xff]
        %v535 = vld [vmem:[#allocation2 + $0xd8] sm:$0xff]
        %v536 = vld [vmem:[#allocation2 + $0xe0] sm:$0xff]
        %v537 = vld [vmem:[#allocation2 + $0xe8] sm:$0xff]
        %v538 = vld [vmem:[#allocation2 + $0xf0] sm:$0xff]
        %v539 = vld [vmem:[%s253 + $0x8] sm:$0xff]
        %v540 = vld [vmem:[%s253 + $0x10] sm:$0xff]
        %v541 = vld [vmem:[%s253 + $0x18] sm:$0xff]
        %v542 = vld [vmem:[%s253 + $0x20] sm:$0xff]
        %v543 = vld [vmem:[%s253 + $0x28] sm:$0xff]
        %v544 = vld [vmem:[%s253 + $0x30] sm:$0xff]
        %v545 = vld [vmem:[%s253 + $0x38] sm:$0xff]
        %v546 = vld [vmem:[%s253 + $0x40] sm:$0xff]
        %v547 = vld [vmem:[%s253 + $0x48] sm:$0xff]
        %v548 = vld [vmem:[%s253 + $0x50] sm:$0xff]
        %v549 = vld [vmem:[%s253 + $0x58] sm:$0xff]
        %v550 = vld [vmem:[%s253 + $0x60] sm:$0xff]
        %v551 = vld [vmem:[%s253 + $0x68] sm:$0xff]
        %v552 = vld [vmem:[%s253 + $0x70] sm:$0xff]
        %v553 = vld [vmem:[%s253 + $0x78] sm:$0xff]
        %v554 = vld [vmem:[%s253 + $0x80] sm:$0xff]
        %v555 = vld [vmem:[%s253 + $0x88] sm:$0xff]
        %v556 = vld [vmem:[%s253 + $0x90] sm:$0xff]
        %v557 = vld [vmem:[%s253 + $0x98] sm:$0xff]
        %v558 = vld [vmem:[%s253 + $0xa0] sm:$0xff]
        %v559 = vld [vmem:[%s253 + $0xa8] sm:$0xff]
        %v560 = vld [vmem:[%s253 + $0xb0] sm:$0xff]
        %v561 = vld [vmem:[%s253 + $0xb8] sm:$0xff]
        %v562 = vld [vmem:[%s253 + $0xc0] sm:$0xff]
        %v563 = vld [vmem:[%s253 + $0xc8] sm:$0xff]
        %v564 = vld [vmem:[%s253 + $0xd0] sm:$0xff]
        %v565 = vld [vmem:[%s253 + $0xd8] sm:$0xff]
        %v566 = vld [vmem:[%s253 + $0xe0] sm:$0xff]
        %v567 = vld [vmem:[%s253 + $0xe8] sm:$0xff]
        %v568 = vld [vmem:[%s253 + $0xf0] sm:$0xff]
        %v569 = vld [vmem:[%s253 + $0xf8] sm:$0xff]
        %s570 = scalar_lea.vmem [#allocation8], 128
        %v571 = vld [vmem:[%s570] sm:$0xff]
        %v572 = vld [vmem:[%s570 + $0x8] sm:$0xff]
        %v573 = vld [vmem:[%s570 + $0x10] sm:$0xff]
        %v574 = vld [vmem:[%s570 + $0x18] sm:$0xff]
        %v575 = vld [vmem:[%s570 + $0x20] sm:$0xff]
        %v576 = vld [vmem:[%s570 + $0x28] sm:$0xff]
        %v577 = vld [vmem:[%s570 + $0x30] sm:$0xff]
        %v578 = vld [vmem:[%s570 + $0x38] sm:$0xff]
        %v579 = vld [vmem:[%s570 + $0x40] sm:$0xff]
        %v580 = vld [vmem:[%s570 + $0x48] sm:$0xff]
        %v581 = vld [vmem:[%s570 + $0x50] sm:$0xff]
        %v582 = vld [vmem:[%s570 + $0x58] sm:$0xff]
        %v583 = vld [vmem:[%s570 + $0x60] sm:$0xff]
        %v584 = vld [vmem:[%s570 + $0x68] sm:$0xff]
        %v585 = vld [vmem:[%s570 + $0x70] sm:$0xff]
        %v586 = vld [vmem:[%s570 + $0x78] sm:$0xff]
        %587 = vmatpush.msra.mxu0 %v586
        %588 = vmatpush.msra.mxu0 %v585
        %589 = vmatpush.msra.mxu0 %v584
        %590 = vmatpush.msra.mxu0 %v583
        %591 = vmatpush.msra.mxu0 %v582
        %592 = vmatpush.msra.mxu0 %v581
        %593 = vmatpush.msra.mxu0 %v580
        %594 = vmatpush.msra.mxu0 %v579
        %595 = vmatpush.msra.mxu0 %v578
        %596 = vmatpush.msra.mxu0 %v577
        %597 = vmatpush.msra.mxu0 %v576
        %598 = vmatpush.msra.mxu0 %v575
        %599 = vmatpush.msra.mxu0 %v574
        %600 = vmatpush.msra.mxu0 %v573
        %601 = vmatpush.msra.mxu0 %v572
        %602 = vmatpush.msra.mxu0 %v571
        %603 = vmatmul.f32.gmra.mxu0 %v539
        %v604 = vpop.f32.mrf.mxu0
        %v605 = vadd.f32 0.0, %v604
        %606 = vmatmul.f32.gmra.mxu0 %v540
        %v607 = vpop.f32.mrf.mxu0
        %v608 = vadd.f32 0.0, %v607
        %609 = vmatmul.f32.gmra.mxu0 %v541
        %v610 = vpop.f32.mrf.mxu0
        %v611 = vadd.f32 0.0, %v610
        %612 = vmatmul.f32.gmra.mxu0 %v542
        %v613 = vpop.f32.mrf.mxu0
        %v614 = vadd.f32 0.0, %v613
        %615 = vmatmul.f32.gmra.mxu0 %v543
        %v616 = vpop.f32.mrf.mxu0
        %v617 = vadd.f32 0.0, %v616
        %618 = vmatmul.f32.gmra.mxu0 %v544
        %v619 = vpop.f32.mrf.mxu0
        %v620 = vadd.f32 0.0, %v619
        %621 = vmatmul.f32.gmra.mxu0 %v545
        %v622 = vpop.f32.mrf.mxu0
        %v623 = vadd.f32 0.0, %v622
        %624 = vmatmul.f32.gmra.mxu0 %v546
        %v625 = vpop.f32.mrf.mxu0
        %v626 = vadd.f32 0.0, %v625
        %627 = vmatmul.f32.gmra.mxu0 %v547
        %v628 = vpop.f32.mrf.mxu0
        %v629 = vadd.f32 0.0, %v628
        %630 = vmatmul.f32.gmra.mxu0 %v548
        %v631 = vpop.f32.mrf.mxu0
        %v632 = vadd.f32 0.0, %v631
        %633 = vmatmul.f32.gmra.mxu0 %v549
        %v634 = vpop.f32.mrf.mxu0
        %v635 = vadd.f32 0.0, %v634
        %636 = vmatmul.f32.gmra.mxu0 %v550
        %v637 = vpop.f32.mrf.mxu0
        %v638 = vadd.f32 0.0, %v637
        %639 = vmatmul.f32.gmra.mxu0 %v551
        %v640 = vpop.f32.mrf.mxu0
        %v641 = vadd.f32 0.0, %v640
        %642 = vmatmul.f32.gmra.mxu0 %v552
        %v643 = vpop.f32.mrf.mxu0
        %v644 = vadd.f32 0.0, %v643
        %645 = vmatmul.f32.gmra.mxu0 %v553
        %v646 = vpop.f32.mrf.mxu0
        %v647 = vadd.f32 0.0, %v646
        %648 = vmatmul.f32.gmra.mxu0 %v554
        %v649 = vpop.f32.mrf.mxu0
        %v650 = vadd.f32 0.0, %v649
        %651 = vmatmul.f32.gmra.mxu0 %v555
        %v652 = vpop.f32.mrf.mxu0
        %v653 = vadd.f32 0.0, %v652
        %654 = vmatmul.f32.gmra.mxu0 %v556
        %v655 = vpop.f32.mrf.mxu0
        %v656 = vadd.f32 0.0, %v655
        %657 = vmatmul.f32.gmra.mxu0 %v557
        %v658 = vpop.f32.mrf.mxu0
        %v659 = vadd.f32 0.0, %v658
        %660 = vmatmul.f32.gmra.mxu0 %v558
        %v661 = vpop.f32.mrf.mxu0
        %v662 = vadd.f32 0.0, %v661
        %663 = vmatmul.f32.gmra.mxu0 %v559
        %v664 = vpop.f32.mrf.mxu0
        %v665 = vadd.f32 0.0, %v664
        %666 = vmatmul.f32.gmra.mxu0 %v560
        %v667 = vpop.f32.mrf.mxu0
        %v668 = vadd.f32 0.0, %v667
        %669 = vmatmul.f32.gmra.mxu0 %v561
        %v670 = vpop.f32.mrf.mxu0
        %v671 = vadd.f32 0.0, %v670
        %672 = vmatmul.f32.gmra.mxu0 %v562
        %v673 = vpop.f32.mrf.mxu0
        %v674 = vadd.f32 0.0, %v673
        %675 = vmatmul.f32.gmra.mxu0 %v563
        %v676 = vpop.f32.mrf.mxu0
        %v677 = vadd.f32 0.0, %v676
        %678 = vmatmul.f32.gmra.mxu0 %v564
        %v679 = vpop.f32.mrf.mxu0
        %v680 = vadd.f32 0.0, %v679
        %681 = vmatmul.f32.gmra.mxu0 %v565
        %v682 = vpop.f32.mrf.mxu0
        %v683 = vadd.f32 0.0, %v682
        %684 = vmatmul.f32.gmra.mxu0 %v566
        %v685 = vpop.f32.mrf.mxu0
        %v686 = vadd.f32 0.0, %v685
        %687 = vmatmul.f32.gmra.mxu0 %v567
        %v688 = vpop.f32.mrf.mxu0
        %v689 = vadd.f32 0.0, %v688
        %690 = vmatmul.f32.gmra.mxu0 %v568
        %v691 = vpop.f32.mrf.mxu0
        %v692 = vadd.f32 0.0, %v691
        %693 = vmatmul.f32.gmra.mxu0 %v569
        %v694 = vpop.f32.mrf.mxu0
        %v695 = vadd.f32 0.0, %v694
        %696 = vdwg.mxu0
        %v697 = vadd.f32 %v508, %v605
        %v698 = vadd.f32 %v509, %v608
        %v699 = vadd.f32 %v510, %v611
        %v700 = vadd.f32 %v511, %v614
        %v701 = vadd.f32 %v512, %v617
        %v702 = vadd.f32 %v513, %v620
        %v703 = vadd.f32 %v514, %v623
        %v704 = vadd.f32 %v515, %v626
        %v705 = vadd.f32 %v516, %v629
        %v706 = vadd.f32 %v517, %v632
        %v707 = vadd.f32 %v518, %v635
        %v708 = vadd.f32 %v519, %v638
        %v709 = vadd.f32 %v520, %v641
        %v710 = vadd.f32 %v521, %v644
        %v711 = vadd.f32 %v522, %v647
        %v712 = vadd.f32 %v523, %v650
        %v713 = vadd.f32 %v524, %v653
        %v714 = vadd.f32 %v525, %v656
        %v715 = vadd.f32 %v526, %v659
        %v716 = vadd.f32 %v527, %v662
        %v717 = vadd.f32 %v528, %v665
        %v718 = vadd.f32 %v529, %v668
        %v719 = vadd.f32 %v530, %v671
        %v720 = vadd.f32 %v531, %v674
        %v721 = vadd.f32 %v532, %v677
        %v722 = vadd.f32 %v533, %v680
        %v723 = vadd.f32 %v534, %v683
        %v724 = vadd.f32 %v535, %v686
        %v725 = vadd.f32 %v536, %v689
        %v726 = vadd.f32 %v537, %v692
        %v727 = vadd.f32 %v538, %v695
        %728 = vst [vmem:[#allocation2] sm:$0xff] %v697
        %729 = vst [vmem:[#allocation2 + $0x8] sm:$0xff] %v698
        %730 = vst [vmem:[#allocation2 + $0x10] sm:$0xff] %v699
        %731 = vst [vmem:[#allocation2 + $0x18] sm:$0xff] %v700
        %732 = vst [vmem:[#allocation2 + $0x20] sm:$0xff] %v701
        %733 = vst [vmem:[#allocation2 + $0x28] sm:$0xff] %v702
        %734 = vst [vmem:[#allocation2 + $0x30] sm:$0xff] %v703
        %735 = vst [vmem:[#allocation2 + $0x38] sm:$0xff] %v704
        %736 = vst [vmem:[#allocation2 + $0x40] sm:$0xff] %v705
        %737 = vst [vmem:[#allocation2 + $0x48] sm:$0xff] %v706
        %738 = vst [vmem:[#allocation2 + $0x50] sm:$0xff] %v707
        %739 = vst [vmem:[#allocation2 + $0x58] sm:$0xff] %v708
        %740 = vst [vmem:[#allocation2 + $0x60] sm:$0xff] %v709
        %741 = vst [vmem:[#allocation2 + $0x68] sm:$0xff] %v710
        %742 = vst [vmem:[#allocation2 + $0x70] sm:$0xff] %v711
        %743 = vst [vmem:[#allocation2 + $0x78] sm:$0xff] %v712
        %744 = vst [vmem:[#allocation2 + $0x80] sm:$0xff] %v713
        %745 = vst [vmem:[#allocation2 + $0x88] sm:$0xff] %v714
        %746 = vst [vmem:[#allocation2 + $0x90] sm:$0xff] %v715
        %747 = vst [vmem:[#allocation2 + $0x98] sm:$0xff] %v716
        %748 = vst [vmem:[#allocation2 + $0xa0] sm:$0xff] %v717
        %749 = vst [vmem:[#allocation2 + $0xa8] sm:$0xff] %v718
        %750 = vst [vmem:[#allocation2 + $0xb0] sm:$0xff] %v719
        %751 = vst [vmem:[#allocation2 + $0xb8] sm:$0xff] %v720
        %752 = vst [vmem:[#allocation2 + $0xc0] sm:$0xff] %v721
        %753 = vst [vmem:[#allocation2 + $0xc8] sm:$0xff] %v722
        %754 = vst [vmem:[#allocation2 + $0xd0] sm:$0xff] %v723
        %755 = vst [vmem:[#allocation2 + $0xd8] sm:$0xff] %v724
        %756 = vst [vmem:[#allocation2 + $0xe0] sm:$0xff] %v725
        %757 = vst [vmem:[#allocation2 + $0xe8] sm:$0xff] %v726
        %758 = vst [vmem:[#allocation2 + $0xf0] sm:$0xff] %v727
        %v759 = vld [vmem:[#allocation2 + $0xf8] sm:$0xff]
        %v760 = vld [vmem:[%s263] sm:$0xff]
        %v761 = vld [vmem:[%s570] sm:$0xff]
        %v762 = vld [vmem:[%s570 + $0x8] sm:$0xff]
        %v763 = vld [vmem:[%s570 + $0x10] sm:$0xff]
        %v764 = vld [vmem:[%s570 + $0x18] sm:$0xff]
        %v765 = vld [vmem:[%s570 + $0x20] sm:$0xff]
        %v766 = vld [vmem:[%s570 + $0x28] sm:$0xff]
        %v767 = vld [vmem:[%s570 + $0x30] sm:$0xff]
        %v768 = vld [vmem:[%s570 + $0x38] sm:$0xff]
        %v769 = vld [vmem:[%s570 + $0x40] sm:$0xff]
        %v770 = vld [vmem:[%s570 + $0x48] sm:$0xff]
        %v771 = vld [vmem:[%s570 + $0x50] sm:$0xff]
        %v772 = vld [vmem:[%s570 + $0x58] sm:$0xff]
        %v773 = vld [vmem:[%s570 + $0x60] sm:$0xff]
        %v774 = vld [vmem:[%s570 + $0x68] sm:$0xff]
        %v775 = vld [vmem:[%s570 + $0x70] sm:$0xff]
        %v776 = vld [vmem:[%s570 + $0x78] sm:$0xff]
        %777 = vmatpush.msra.mxu0 %v776
        %778 = vmatpush.msra.mxu0 %v775
        %779 = vmatpush.msra.mxu0 %v774
        %780 = vmatpush.msra.mxu0 %v773
        %781 = vmatpush.msra.mxu0 %v772
        %782 = vmatpush.msra.mxu0 %v771
        %783 = vmatpush.msra.mxu0 %v770
        %784 = vmatpush.msra.mxu0 %v769
        %785 = vmatpush.msra.mxu0 %v768
        %786 = vmatpush.msra.mxu0 %v767
        %787 = vmatpush.msra.mxu0 %v766
        %788 = vmatpush.msra.mxu0 %v765
        %789 = vmatpush.msra.mxu0 %v764
        %790 = vmatpush.msra.mxu0 %v763
        %791 = vmatpush.msra.mxu0 %v762
        %792 = vmatpush.msra.mxu0 %v761
        %793 = vmatmul.f32.gmra.mxu0 %v760
        %v794 = vpop.f32.mrf.mxu0
        %v795 = vadd.f32 0.0, %v794
        %796 = vdwg.mxu0
        %v797 = vadd.f32 %v759, %v795
        %798 = vst [vmem:[#allocation2 + $0xf8] sm:$0xff] %v797
        %v799 = vld [vmem:[#allocation2] sm:$0xff]
        %v800 = vld [vmem:[#allocation2 + $0x8] sm:$0xff]
        %v801 = vld [vmem:[#allocation2 + $0x10] sm:$0xff]
        %v802 = vld [vmem:[#allocation2 + $0x18] sm:$0xff]
        %v803 = vld [vmem:[#allocation2 + $0x20] sm:$0xff]
        %v804 = vld [vmem:[#allocation2 + $0x28] sm:$0xff]
        %v805 = vld [vmem:[#allocation2 + $0x30] sm:$0xff]
        %v806 = vld [vmem:[#allocation2 + $0x38] sm:$0xff]
        %v807 = vld [vmem:[#allocation2 + $0x40] sm:$0xff]
        %v808 = vld [vmem:[#allocation2 + $0x48] sm:$0xff]
        %v809 = vld [vmem:[#allocation2 + $0x50] sm:$0xff]
        %v810 = vld [vmem:[#allocation2 + $0x58] sm:$0xff]
        %v811 = vld [vmem:[#allocation2 + $0x60] sm:$0xff]
        %v812 = vld [vmem:[#allocation2 + $0x68] sm:$0xff]
        %v813 = vld [vmem:[#allocation2 + $0x70] sm:$0xff]
        %v814 = vld [vmem:[#allocation2 + $0x78] sm:$0xff]
        %v815 = vld [vmem:[#allocation2 + $0x80] sm:$0xff]
        %v816 = vld [vmem:[#allocation2 + $0x88] sm:$0xff]
        %v817 = vld [vmem:[#allocation2 + $0x90] sm:$0xff]
        %v818 = vld [vmem:[#allocation2 + $0x98] sm:$0xff]
        %v819 = vld [vmem:[#allocation2 + $0xa0] sm:$0xff]
        %v820 = vld [vmem:[#allocation2 + $0xa8] sm:$0xff]
        %v821 = vld [vmem:[#allocation2 + $0xb0] sm:$0xff]
        %v822 = vld [vmem:[#allocation2 + $0xb8] sm:$0xff]
        %v823 = vld [vmem:[#allocation2 + $0xc0] sm:$0xff]
        %v824 = vld [vmem:[#allocation2 + $0xc8] sm:$0xff]
        %v825 = vld [vmem:[#allocation2 + $0xd0] sm:$0xff]
        %v826 = vld [vmem:[#allocation2 + $0xd8] sm:$0xff]
        %v827 = vld [vmem:[#allocation2 + $0xe0] sm:$0xff]
        %v828 = vld [vmem:[#allocation2 + $0xe8] sm:$0xff]
        %v829 = vld [vmem:[%s253 + $0x10] sm:$0xff]
        %v830 = vld [vmem:[%s253 + $0x18] sm:$0xff]
        %v831 = vld [vmem:[%s253 + $0x20] sm:$0xff]
        %v832 = vld [vmem:[%s253 + $0x28] sm:$0xff]
        %v833 = vld [vmem:[%s253 + $0x30] sm:$0xff]
        %v834 = vld [vmem:[%s253 + $0x38] sm:$0xff]
        %v835 = vld [vmem:[%s253 + $0x40] sm:$0xff]
        %v836 = vld [vmem:[%s253 + $0x48] sm:$0xff]
        %v837 = vld [vmem:[%s253 + $0x50] sm:$0xff]
        %v838 = vld [vmem:[%s253 + $0x58] sm:$0xff]
        %v839 = vld [vmem:[%s253 + $0x60] sm:$0xff]
        %v840 = vld [vmem:[%s253 + $0x68] sm:$0xff]
        %v841 = vld [vmem:[%s253 + $0x70] sm:$0xff]
        %v842 = vld [vmem:[%s253 + $0x78] sm:$0xff]
        %v843 = vld [vmem:[%s253 + $0x80] sm:$0xff]
        %v844 = vld [vmem:[%s253 + $0x88] sm:$0xff]
        %v845 = vld [vmem:[%s253 + $0x90] sm:$0xff]
        %v846 = vld [vmem:[%s253 + $0x98] sm:$0xff]
        %v847 = vld [vmem:[%s253 + $0xa0] sm:$0xff]
        %v848 = vld [vmem:[%s253 + $0xa8] sm:$0xff]
        %v849 = vld [vmem:[%s253 + $0xb0] sm:$0xff]
        %v850 = vld [vmem:[%s253 + $0xb8] sm:$0xff]
        %v851 = vld [vmem:[%s253 + $0xc0] sm:$0xff]
        %v852 = vld [vmem:[%s253 + $0xc8] sm:$0xff]
        %v853 = vld [vmem:[%s253 + $0xd0] sm:$0xff]
        %v854 = vld [vmem:[%s253 + $0xd8] sm:$0xff]
        %v855 = vld [vmem:[%s253 + $0xe0] sm:$0xff]
        %v856 = vld [vmem:[%s253 + $0xe8] sm:$0xff]
        %v857 = vld [vmem:[%s253 + $0xf0] sm:$0xff]
        %v858 = vld [vmem:[%s253 + $0xf8] sm:$0xff]
        %s859 = scalar_lea.vmem [#allocation8], 256
        %v860 = vld [vmem:[%s859] sm:$0xff]
        %v861 = vld [vmem:[%s859 + $0x8] sm:$0xff]
        %v862 = vld [vmem:[%s859 + $0x10] sm:$0xff]
        %v863 = vld [vmem:[%s859 + $0x18] sm:$0xff]
        %v864 = vld [vmem:[%s859 + $0x20] sm:$0xff]
        %v865 = vld [vmem:[%s859 + $0x28] sm:$0xff]
        %v866 = vld [vmem:[%s859 + $0x30] sm:$0xff]
        %v867 = vld [vmem:[%s859 + $0x38] sm:$0xff]
        %v868 = vld [vmem:[%s859 + $0x40] sm:$0xff]
        %v869 = vld [vmem:[%s859 + $0x48] sm:$0xff]
        %v870 = vld [vmem:[%s859 + $0x50] sm:$0xff]
        %v871 = vld [vmem:[%s859 + $0x58] sm:$0xff]
        %v872 = vld [vmem:[%s859 + $0x60] sm:$0xff]
        %v873 = vld [vmem:[%s859 + $0x68] sm:$0xff]
        %v874 = vld [vmem:[%s859 + $0x70] sm:$0xff]
        %v875 = vld [vmem:[%s859 + $0x78] sm:$0xff]
        %876 = vmatpush.msra.mxu0 %v875
        %877 = vmatpush.msra.mxu0 %v874
        %878 = vmatpush.msra.mxu0 %v873
        %879 = vmatpush.msra.mxu0 %v872
        %880 = vmatpush.msra.mxu0 %v871
        %881 = vmatpush.msra.mxu0 %v870
        %882 = vmatpush.msra.mxu0 %v869
        %883 = vmatpush.msra.mxu0 %v868
        %884 = vmatpush.msra.mxu0 %v867
        %885 = vmatpush.msra.mxu0 %v866
        %886 = vmatpush.msra.mxu0 %v865
        %887 = vmatpush.msra.mxu0 %v864
        %888 = vmatpush.msra.mxu0 %v863
        %889 = vmatpush.msra.mxu0 %v862
        %890 = vmatpush.msra.mxu0 %v861
        %891 = vmatpush.msra.mxu0 %v860
        %892 = vmatmul.f32.gmra.mxu0 %v829
        %v893 = vpop.f32.mrf.mxu0
        %v894 = vadd.f32 0.0, %v893
        %895 = vmatmul.f32.gmra.mxu0 %v830
        %v896 = vpop.f32.mrf.mxu0
        %v897 = vadd.f32 0.0, %v896
        %898 = vmatmul.f32.gmra.mxu0 %v831
        %v899 = vpop.f32.mrf.mxu0
        %v900 = vadd.f32 0.0, %v899
        %901 = vmatmul.f32.gmra.mxu0 %v832
        %v902 = vpop.f32.mrf.mxu0
        %v903 = vadd.f32 0.0, %v902
        %904 = vmatmul.f32.gmra.mxu0 %v833
        %v905 = vpop.f32.mrf.mxu0
        %v906 = vadd.f32 0.0, %v905
        %907 = vmatmul.f32.gmra.mxu0 %v834
        %v908 = vpop.f32.mrf.mxu0
        %v909 = vadd.f32 0.0, %v908
        %910 = vmatmul.f32.gmra.mxu0 %v835
        %v911 = vpop.f32.mrf.mxu0
        %v912 = vadd.f32 0.0, %v911
        %913 = vmatmul.f32.gmra.mxu0 %v836
        %v914 = vpop.f32.mrf.mxu0
        %v915 = vadd.f32 0.0, %v914
        %916 = vmatmul.f32.gmra.mxu0 %v837
        %v917 = vpop.f32.mrf.mxu0
        %v918 = vadd.f32 0.0, %v917
        %919 = vmatmul.f32.gmra.mxu0 %v838
        %v920 = vpop.f32.mrf.mxu0
        %v921 = vadd.f32 0.0, %v920
        %922 = vmatmul.f32.gmra.mxu0 %v839
        %v923 = vpop.f32.mrf.mxu0
        %v924 = vadd.f32 0.0, %v923
        %925 = vmatmul.f32.gmra.mxu0 %v840
        %v926 = vpop.f32.mrf.mxu0
        %v927 = vadd.f32 0.0, %v926
        %928 = vmatmul.f32.gmra.mxu0 %v841
        %v929 = vpop.f32.mrf.mxu0
        %v930 = vadd.f32 0.0, %v929
        %931 = vmatmul.f32.gmra.mxu0 %v842
        %v932 = vpop.f32.mrf.mxu0
        %v933 = vadd.f32 0.0, %v932
        %934 = vmatmul.f32.gmra.mxu0 %v843
        %v935 = vpop.f32.mrf.mxu0
        %v936 = vadd.f32 0.0, %v935
        %937 = vmatmul.f32.gmra.mxu0 %v844
        %v938 = vpop.f32.mrf.mxu0
        %v939 = vadd.f32 0.0, %v938
        %940 = vmatmul.f32.gmra.mxu0 %v845
        %v941 = vpop.f32.mrf.mxu0
        %v942 = vadd.f32 0.0, %v941
        %943 = vmatmul.f32.gmra.mxu0 %v846
        %v944 = vpop.f32.mrf.mxu0
        %v945 = vadd.f32 0.0, %v944
        %946 = vmatmul.f32.gmra.mxu0 %v847
        %v947 = vpop.f32.mrf.mxu0
        %v948 = vadd.f32 0.0, %v947
        %949 = vmatmul.f32.gmra.mxu0 %v848
        %v950 = vpop.f32.mrf.mxu0
        %v951 = vadd.f32 0.0, %v950
        %952 = vmatmul.f32.gmra.mxu0 %v849
        %v953 = vpop.f32.mrf.mxu0
        %v954 = vadd.f32 0.0, %v953
        %955 = vmatmul.f32.gmra.mxu0 %v850
        %v956 = vpop.f32.mrf.mxu0
        %v957 = vadd.f32 0.0, %v956
        %958 = vmatmul.f32.gmra.mxu0 %v851
        %v959 = vpop.f32.mrf.mxu0
        %v960 = vadd.f32 0.0, %v959
        %961 = vmatmul.f32.gmra.mxu0 %v852
        %v962 = vpop.f32.mrf.mxu0
        %v963 = vadd.f32 0.0, %v962
        %964 = vmatmul.f32.gmra.mxu0 %v853
        %v965 = vpop.f32.mrf.mxu0
        %v966 = vadd.f32 0.0, %v965
        %967 = vmatmul.f32.gmra.mxu0 %v854
        %v968 = vpop.f32.mrf.mxu0
        %v969 = vadd.f32 0.0, %v968
        %970 = vmatmul.f32.gmra.mxu0 %v855
        %v971 = vpop.f32.mrf.mxu0
        %v972 = vadd.f32 0.0, %v971
        %973 = vmatmul.f32.gmra.mxu0 %v856
        %v974 = vpop.f32.mrf.mxu0
        %v975 = vadd.f32 0.0, %v974
        %976 = vmatmul.f32.gmra.mxu0 %v857
        %v977 = vpop.f32.mrf.mxu0
        %v978 = vadd.f32 0.0, %v977
        %979 = vmatmul.f32.gmra.mxu0 %v858
        %v980 = vpop.f32.mrf.mxu0
        %v981 = vadd.f32 0.0, %v980
        %982 = vdwg.mxu0
        %v983 = vadd.f32 %v799, %v894
        %v984 = vadd.f32 %v800, %v897
        %v985 = vadd.f32 %v801, %v900
        %v986 = vadd.f32 %v802, %v903
        %v987 = vadd.f32 %v803, %v906
        %v988 = vadd.f32 %v804, %v909
        %v989 = vadd.f32 %v805, %v912
        %v990 = vadd.f32 %v806, %v915
        %v991 = vadd.f32 %v807, %v918
        %v992 = vadd.f32 %v808, %v921
        %v993 = vadd.f32 %v809, %v924
        %v994 = vadd.f32 %v810, %v927
        %v995 = vadd.f32 %v811, %v930
        %v996 = vadd.f32 %v812, %v933
        %v997 = vadd.f32 %v813, %v936
        %v998 = vadd.f32 %v814, %v939
        %v999 = vadd.f32 %v815, %v942
        %v1000 = vadd.f32 %v816, %v945
        %v1001 = vadd.f32 %v817, %v948
        %v1002 = vadd.f32 %v818, %v951
        %v1003 = vadd.f32 %v819, %v954
        %v1004 = vadd.f32 %v820, %v957
        %v1005 = vadd.f32 %v821, %v960
        %v1006 = vadd.f32 %v822, %v963
        %v1007 = vadd.f32 %v823, %v966
        %v1008 = vadd.f32 %v824, %v969
        %v1009 = vadd.f32 %v825, %v972
        %v1010 = vadd.f32 %v826, %v975
        %v1011 = vadd.f32 %v827, %v978
        %v1012 = vadd.f32 %v828, %v981
        %1013 = vst [vmem:[#allocation2] sm:$0xff] %v983
        %1014 = vst [vmem:[#allocation2 + $0x8] sm:$0xff] %v984
        %1015 = vst [vmem:[#allocation2 + $0x10] sm:$0xff] %v985
        %1016 = vst [vmem:[#allocation2 + $0x18] sm:$0xff] %v986
        %1017 = vst [vmem:[#allocation2 + $0x20] sm:$0xff] %v987
        %1018 = vst [vmem:[#allocation2 + $0x28] sm:$0xff] %v988
        %1019 = vst [vmem:[#allocation2 + $0x30] sm:$0xff] %v989
        %1020 = vst [vmem:[#allocation2 + $0x38] sm:$0xff] %v990
        %1021 = vst [vmem:[#allocation2 + $0x40] sm:$0xff] %v991
        %1022 = vst [vmem:[#allocation2 + $0x48] sm:$0xff] %v992
        %1023 = vst [vmem:[#allocation2 + $0x50] sm:$0xff] %v993
        %1024 = vst [vmem:[#allocation2 + $0x58] sm:$0xff] %v994
        %1025 = vst [vmem:[#allocation2 + $0x60] sm:$0xff] %v995
        %1026 = vst [vmem:[#allocation2 + $0x68] sm:$0xff] %v996
        %1027 = vst [vmem:[#allocation2 + $0x70] sm:$0xff] %v997
        %1028 = vst [vmem:[#allocation2 + $0x78] sm:$0xff] %v998
        %1029 = vst [vmem:[#allocation2 + $0x80] sm:$0xff] %v999
        %1030 = vst [vmem:[#allocation2 + $0x88] sm:$0xff] %v1000
        %1031 = vst [vmem:[#allocation2 + $0x90] sm:$0xff] %v1001
        %1032 = vst [vmem:[#allocation2 + $0x98] sm:$0xff] %v1002
        %1033 = vst [vmem:[#allocation2 + $0xa0] sm:$0xff] %v1003
        %1034 = vst [vmem:[#allocation2 + $0xa8] sm:$0xff] %v1004
        %1035 = vst [vmem:[#allocation2 + $0xb0] sm:$0xff] %v1005
        %1036 = vst [vmem:[#allocation2 + $0xb8] sm:$0xff] %v1006
        %1037 = vst [vmem:[#allocation2 + $0xc0] sm:$0xff] %v1007
        %1038 = vst [vmem:[#allocation2 + $0xc8] sm:$0xff] %v1008
        %1039 = vst [vmem:[#allocation2 + $0xd0] sm:$0xff] %v1009
        %1040 = vst [vmem:[#allocation2 + $0xd8] sm:$0xff] %v1010
        %1041 = vst [vmem:[#allocation2 + $0xe0] sm:$0xff] %v1011
        %1042 = vst [vmem:[#allocation2 + $0xe8] sm:$0xff] %v1012
        %v1043 = vld [vmem:[#allocation2 + $0xf0] sm:$0xff]
        %v1044 = vld [vmem:[#allocation2 + $0xf8] sm:$0xff]
        %v1045 = vld [vmem:[%s263] sm:$0xff]
        %v1046 = vld [vmem:[%s263 + $0x8] sm:$0xff]
        %v1047 = vld [vmem:[%s859] sm:$0xff]
        %v1048 = vld [vmem:[%s859 + $0x8] sm:$0xff]
        %v1049 = vld [vmem:[%s859 + $0x10] sm:$0xff]
        %v1050 = vld [vmem:[%s859 + $0x18] sm:$0xff]
        %v1051 = vld [vmem:[%s859 + $0x20] sm:$0xff]
        %v1052 = vld [vmem:[%s859 + $0x28] sm:$0xff]
        %v1053 = vld [vmem:[%s859 + $0x30] sm:$0xff]
        %v1054 = vld [vmem:[%s859 + $0x38] sm:$0xff]
        %v1055 = vld [vmem:[%s859 + $0x40] sm:$0xff]
        %v1056 = vld [vmem:[%s859 + $0x48] sm:$0xff]
        %v1057 = vld [vmem:[%s859 + $0x50] sm:$0xff]
        %v1058 = vld [vmem:[%s859 + $0x58] sm:$0xff]
        %v1059 = vld [vmem:[%s859 + $0x60] sm:$0xff]
        %v1060 = vld [vmem:[%s859 + $0x68] sm:$0xff]
        %v1061 = vld [vmem:[%s859 + $0x70] sm:$0xff]
        %v1062 = vld [vmem:[%s859 + $0x78] sm:$0xff]
        %1063 = vmatpush.msra.mxu0 %v1062
        %1064 = vmatpush.msra.mxu0 %v1061
        %1065 = vmatpush.msra.mxu0 %v1060
        %1066 = vmatpush.msra.mxu0 %v1059
        %1067 = vmatpush.msra.mxu0 %v1058
        %1068 = vmatpush.msra.mxu0 %v1057
        %1069 = vmatpush.msra.mxu0 %v1056
        %1070 = vmatpush.msra.mxu0 %v1055
        %1071 = vmatpush.msra.mxu0 %v1054
        %1072 = vmatpush.msra.mxu0 %v1053
        %1073 = vmatpush.msra.mxu0 %v1052
        %1074 = vmatpush.msra.mxu0 %v1051
        %1075 = vmatpush.msra.mxu0 %v1050
        %1076 = vmatpush.msra.mxu0 %v1049
        %1077 = vmatpush.msra.mxu0 %v1048
        %1078 = vmatpush.msra.mxu0 %v1047
        %1079 = vmatmul.f32.gmra.mxu0 %v1045
        %v1080 = vpop.f32.mrf.mxu0
        %v1081 = vadd.f32 0.0, %v1080
        %1082 = vmatmul.f32.gmra.mxu0 %v1046
        %v1083 = vpop.f32.mrf.mxu0
        %v1084 = vadd.f32 0.0, %v1083
        %1085 = vdwg.mxu0
        %v1086 = vadd.f32 %v1043, %v1081
        %v1087 = vadd.f32 %v1044, %v1084
        %1088 = vst [vmem:[#allocation2 + $0xf0] sm:$0xff] %v1086
        %1089 = vst [vmem:[#allocation2 + $0xf8] sm:$0xff] %v1087
        %v1090 = vld [vmem:[#allocation2] sm:$0xff]
        %v1091 = vld [vmem:[#allocation2 + $0x8] sm:$0xff]
        %v1092 = vld [vmem:[#allocation2 + $0x10] sm:$0xff]
        %v1093 = vld [vmem:[#allocation2 + $0x18] sm:$0xff]
        %v1094 = vld [vmem:[#allocation2 + $0x20] sm:$0xff]
        %v1095 = vld [vmem:[#allocation2 + $0x28] sm:$0xff]
        %v1096 = vld [vmem:[#allocation2 + $0x30] sm:$0xff]
        %v1097 = vld [vmem:[#allocation2 + $0x38] sm:$0xff]
        %v1098 = vld [vmem:[#allocation2 + $0x40] sm:$0xff]
        %v1099 = vld [vmem:[#allocation2 + $0x48] sm:$0xff]
        %v1100 = vld [vmem:[#allocation2 + $0x50] sm:$0xff]
        %v1101 = vld [vmem:[#allocation2 + $0x58] sm:$0xff]
        %v1102 = vld [vmem:[#allocation2 + $0x60] sm:$0xff]
        %v1103 = vld [vmem:[#allocation2 + $0x68] sm:$0xff]
        %v1104 = vld [vmem:[#allocation2 + $0x70] sm:$0xff]
        %v1105 = vld [vmem:[#allocation2 + $0x78] sm:$0xff]
        %v1106 = vld [vmem:[#allocation2 + $0x80] sm:$0xff]
        %v1107 = vld [vmem:[#allocation2 + $0x88] sm:$0xff]
        %v1108 = vld [vmem:[#allocation2 + $0x90] sm:$0xff]
        %v1109 = vld [vmem:[#allocation2 + $0x98] sm:$0xff]
        %v1110 = vld [vmem:[#allocation2 + $0xa0] sm:$0xff]
        %v1111 = vld [vmem:[#allocation2 + $0xa8] sm:$0xff]
        %v1112 = vld [vmem:[#allocation2 + $0xb0] sm:$0xff]
        %v1113 = vld [vmem:[#allocation2 + $0xb8] sm:$0xff]
        %v1114 = vld [vmem:[#allocation2 + $0xc0] sm:$0xff]
        %v1115 = vld [vmem:[#allocation2 + $0xc8] sm:$0xff]
        %v1116 = vld [vmem:[#allocation2 + $0xd0] sm:$0xff]
        %v1117 = vld [vmem:[#allocation2 + $0xd8] sm:$0xff]
        %v1118 = vld [vmem:[#allocation2 + $0xe0] sm:$0xff]
        %v1119 = vld [vmem:[#allocation2 + $0xe8] sm:$0xff]
        %v1120 = vmax.f32 %v1090, 0.0
        %v1121 = vmax.f32 %v1091, 0.0
        %v1122 = vmax.f32 %v1092, 0.0
        %v1123 = vmax.f32 %v1093, 0.0
        %v1124 = vmax.f32 %v1094, 0.0
        %v1125 = vmax.f32 %v1095, 0.0
        %v1126 = vmax.f32 %v1096, 0.0
        %v1127 = vmax.f32 %v1097, 0.0
        %v1128 = vmax.f32 %v1098, 0.0
        %v1129 = vmax.f32 %v1099, 0.0
        %v1130 = vmax.f32 %v1100, 0.0
        %v1131 = vmax.f32 %v1101, 0.0
        %v1132 = vmax.f32 %v1102, 0.0
        %v1133 = vmax.f32 %v1103, 0.0
        %v1134 = vmax.f32 %v1104, 0.0
        %v1135 = vmax.f32 %v1105, 0.0
        %v1136 = vmax.f32 %v1106, 0.0
        %v1137 = vmax.f32 %v1107, 0.0
        %v1138 = vmax.f32 %v1108, 0.0
        %v1139 = vmax.f32 %v1109, 0.0
        %v1140 = vmax.f32 %v1110, 0.0
        %v1141 = vmax.f32 %v1111, 0.0
        %v1142 = vmax.f32 %v1112, 0.0
        %v1143 = vmax.f32 %v1113, 0.0
        %v1144 = vmax.f32 %v1114, 0.0
        %v1145 = vmax.f32 %v1115, 0.0
        %v1146 = vmax.f32 %v1116, 0.0
        %v1147 = vmax.f32 %v1117, 0.0
        %v1148 = vmax.f32 %v1118, 0.0
        %v1149 = vmax.f32 %v1119, 0.0
        %v1150 = vld [vmem:[%s253 + $0x10] sm:$0xff]
        %v1151 = vld [vmem:[%s253 + $0x18] sm:$0xff]
        %v1152 = vld [vmem:[%s253 + $0x20] sm:$0xff]
        %v1153 = vld [vmem:[%s253 + $0x28] sm:$0xff]
        %v1154 = vld [vmem:[%s253 + $0x30] sm:$0xff]
        %v1155 = vld [vmem:[%s253 + $0x38] sm:$0xff]
        %v1156 = vld [vmem:[%s253 + $0x40] sm:$0xff]
        %v1157 = vld [vmem:[%s253 + $0x48] sm:$0xff]
        %v1158 = vld [vmem:[%s253 + $0x50] sm:$0xff]
        %v1159 = vld [vmem:[%s253 + $0x58] sm:$0xff]
        %v1160 = vld [vmem:[%s253 + $0x60] sm:$0xff]
        %v1161 = vld [vmem:[%s253 + $0x68] sm:$0xff]
        %v1162 = vld [vmem:[%s253 + $0x70] sm:$0xff]
        %v1163 = vld [vmem:[%s253 + $0x78] sm:$0xff]
        %v1164 = vld [vmem:[%s253 + $0x80] sm:$0xff]
        %v1165 = vld [vmem:[%s253 + $0x88] sm:$0xff]
        %v1166 = vld [vmem:[%s253 + $0x90] sm:$0xff]
        %v1167 = vld [vmem:[%s253 + $0x98] sm:$0xff]
        %v1168 = vld [vmem:[%s253 + $0xa0] sm:$0xff]
        %v1169 = vld [vmem:[%s253 + $0xa8] sm:$0xff]
        %v1170 = vld [vmem:[%s253 + $0xb0] sm:$0xff]
        %v1171 = vld [vmem:[%s253 + $0xb8] sm:$0xff]
        %v1172 = vld [vmem:[%s253 + $0xc0] sm:$0xff]
        %v1173 = vld [vmem:[%s253 + $0xc8] sm:$0xff]
        %v1174 = vld [vmem:[%s253 + $0xd0] sm:$0xff]
        %v1175 = vld [vmem:[%s253 + $0xd8] sm:$0xff]
        %v1176 = vld [vmem:[%s253 + $0xe0] sm:$0xff]
        %v1177 = vld [vmem:[%s253 + $0xe8] sm:$0xff]
        %v1178 = vld [vmem:[%s253 + $0xf0] sm:$0xff]
        %v1179 = vld [vmem:[%s253 + $0xf8] sm:$0xff]
        %v1180 = vadd.f32 %v1120, %v1150
        %v1181 = vadd.f32 %v1121, %v1151
        %v1182 = vadd.f32 %v1122, %v1152
        %v1183 = vadd.f32 %v1123, %v1153
        %v1184 = vadd.f32 %v1124, %v1154
        %v1185 = vadd.f32 %v1125, %v1155
        %v1186 = vadd.f32 %v1126, %v1156
        %v1187 = vadd.f32 %v1127, %v1157
        %v1188 = vadd.f32 %v1128, %v1158
        %v1189 = vadd.f32 %v1129, %v1159
        %v1190 = vadd.f32 %v1130, %v1160
        %v1191 = vadd.f32 %v1131, %v1161
        %v1192 = vadd.f32 %v1132, %v1162
        %v1193 = vadd.f32 %v1133, %v1163
        %v1194 = vadd.f32 %v1134, %v1164
        %v1195 = vadd.f32 %v1135, %v1165
        %v1196 = vadd.f32 %v1136, %v1166
        %v1197 = vadd.f32 %v1137, %v1167
        %v1198 = vadd.f32 %v1138, %v1168
        %v1199 = vadd.f32 %v1139, %v1169
        %v1200 = vadd.f32 %v1140, %v1170
        %v1201 = vadd.f32 %v1141, %v1171
        %v1202 = vadd.f32 %v1142, %v1172
        %v1203 = vadd.f32 %v1143, %v1173
        %v1204 = vadd.f32 %v1144, %v1174
        %v1205 = vadd.f32 %v1145, %v1175
        %v1206 = vadd.f32 %v1146, %v1176
        %v1207 = vadd.f32 %v1147, %v1177
        %v1208 = vadd.f32 %v1148, %v1178
        %v1209 = vadd.f32 %v1149, %v1179
        %1210 = vst [vmem:[#allocation2] sm:$0xff] %v1180
        %1211 = vst [vmem:[#allocation2 + $0x8] sm:$0xff] %v1181
        %1212 = vst [vmem:[#allocation2 + $0x10] sm:$0xff] %v1182
        %1213 = vst [vmem:[#allocation2 + $0x18] sm:$0xff] %v1183
        %1214 = vst [vmem:[#allocation2 + $0x20] sm:$0xff] %v1184
        %1215 = vst [vmem:[#allocation2 + $0x28] sm:$0xff] %v1185
        %1216 = vst [vmem:[#allocation2 + $0x30] sm:$0xff] %v1186
        %1217 = vst [vmem:[#allocation2 + $0x38] sm:$0xff] %v1187
        %1218 = vst [vmem:[#allocation2 + $0x40] sm:$0xff] %v1188
        %1219 = vst [vmem:[#allocation2 + $0x48] sm:$0xff] %v1189
        %1220 = vst [vmem:[#allocation2 + $0x50] sm:$0xff] %v1190
        %1221 = vst [vmem:[#allocation2 + $0x58] sm:$0xff] %v1191
        %1222 = vst [vmem:[#allocation2 + $0x60] sm:$0xff] %v1192
        %1223 = vst [vmem:[#allocation2 + $0x68] sm:$0xff] %v1193
        %1224 = vst [vmem:[#allocation2 + $0x70] sm:$0xff] %v1194
        %1225 = vst [vmem:[#allocation2 + $0x78] sm:$0xff] %v1195
        %1226 = vst [vmem:[#allocation2 + $0x80] sm:$0xff] %v1196
        %1227 = vst [vmem:[#allocation2 + $0x88] sm:$0xff] %v1197
        %1228 = vst [vmem:[#allocation2 + $0x90] sm:$0xff] %v1198
        %1229 = vst [vmem:[#allocation2 + $0x98] sm:$0xff] %v1199
        %1230 = vst [vmem:[#allocation2 + $0xa0] sm:$0xff] %v1200
        %1231 = vst [vmem:[#allocation2 + $0xa8] sm:$0xff] %v1201
        %1232 = vst [vmem:[#allocation2 + $0xb0] sm:$0xff] %v1202
        %1233 = vst [vmem:[#allocation2 + $0xb8] sm:$0xff] %v1203
        %1234 = vst [vmem:[#allocation2 + $0xc0] sm:$0xff] %v1204
        %1235 = vst [vmem:[#allocation2 + $0xc8] sm:$0xff] %v1205
        %1236 = vst [vmem:[#allocation2 + $0xd0] sm:$0xff] %v1206
        %1237 = vst [vmem:[#allocation2 + $0xd8] sm:$0xff] %v1207
        %1238 = vst [vmem:[#allocation2 + $0xe0] sm:$0xff] %v1208
        %1239 = vst [vmem:[#allocation2 + $0xe8] sm:$0xff] %v1209
        %v1240 = vld [vmem:[#allocation2 + $0xf0] sm:$0xff]
        %v1241 = vld [vmem:[#allocation2 + $0xf8] sm:$0xff]
        %v1242 = vmax.f32 %v1240, 0.0
        %v1243 = vmax.f32 %v1241, 0.0
        %v1244 = vld [vmem:[%s263] sm:$0xff]
        %v1245 = vld [vmem:[%s263 + $0x8] sm:$0xff]
        %v1246 = vadd.f32 %v1242, %v1244
        %v1247 = vadd.f32 %v1243, %v1245
        %1248 = vst [vmem:[#allocation2 + $0xf0] sm:$0xff] %v1246
        %1249 = vst [vmem:[#allocation2 + $0xf8] sm:$0xff] %v1247
        %v1250 = vld [vmem:[#allocation2] sm:$0xff]
        %v1251 = vld [vmem:[#allocation2 + $0x8] sm:$0xff]
        %v1252 = vld [vmem:[#allocation2 + $0x10] sm:$0xff]
        %v1253 = vld [vmem:[#allocation2 + $0x18] sm:$0xff]
        %v1254 = vld [vmem:[#allocation2 + $0x20] sm:$0xff]
        %v1255 = vld [vmem:[#allocation2 + $0x28] sm:$0xff]
        %v1256 = vld [vmem:[#allocation2 + $0x30] sm:$0xff]
        %v1257 = vld [vmem:[#allocation2 + $0x38] sm:$0xff]
        %v1258 = vld [vmem:[#allocation2 + $0x40] sm:$0xff]
        %v1259 = vld [vmem:[#allocation2 + $0x48] sm:$0xff]
        %v1260 = vld [vmem:[#allocation2 + $0x50] sm:$0xff]
        %v1261 = vld [vmem:[#allocation2 + $0x58] sm:$0xff]
        %v1262 = vld [vmem:[#allocation2 + $0x60] sm:$0xff]
        %v1263 = vld [vmem:[#allocation2 + $0x68] sm:$0xff]
        %v1264 = vld [vmem:[#allocation2 + $0x70] sm:$0xff]
        %v1265 = vld [vmem:[#allocation2 + $0x78] sm:$0xff]
        %v1266 = vld [vmem:[#allocation2 + $0x80] sm:$0xff]
        %v1267 = vld [vmem:[#allocation2 + $0x88] sm:$0xff]
        %v1268 = vld [vmem:[#allocation2 + $0x90] sm:$0xff]
        %v1269 = vld [vmem:[#allocation2 + $0x98] sm:$0xff]
        %v1270 = vld [vmem:[#allocation2 + $0xa0] sm:$0xff]
        %v1271 = vld [vmem:[#allocation2 + $0xa8] sm:$0xff]
        %v1272 = vld [vmem:[#allocation2 + $0xb0] sm:$0xff]
        %v1273 = vld [vmem:[#allocation2 + $0xb8] sm:$0xff]
        %v1274 = vld [vmem:[#allocation2 + $0xc0] sm:$0xff]
        %v1275 = vld [vmem:[#allocation2 + $0xc8] sm:$0xff]
        %v1276 = vld [vmem:[#allocation2 + $0xd0] sm:$0xff]
        %v1277 = vld [vmem:[#allocation2 + $0xd8] sm:$0xff]
        %v1278 = vld [vmem:[#allocation2 + $0xe0] sm:$0xff]
        %v1279 = vld [vmem:[#allocation2 + $0xe8] sm:$0xff]
        %v1280 = vld [vmem:[#allocation2 + $0xf0] sm:$0xff]
        %v1281 = vld [vmem:[#allocation2 + $0xf8] sm:$0xff]
        %1282 = vadd.xlane.f32.xlu0 %v1250
        %v1283 = vpop.xlane.xlu0 %1282
        %1284 = vadd.xlane.f32.xlu0 %v1251
        %v1285 = vpop.xlane.xlu0 %1284
        %1286 = vadd.xlane.f32.xlu0 %v1252
        %v1287 = vpop.xlane.xlu0 %1286
        %1288 = vadd.xlane.f32.xlu0 %v1253
        %v1289 = vpop.xlane.xlu0 %1288
        %1290 = vadd.xlane.f32.xlu0 %v1254
        %v1291 = vpop.xlane.xlu0 %1290
        %1292 = vadd.xlane.f32.xlu0 %v1255
        %v1293 = vpop.xlane.xlu0 %1292
        %1294 = vadd.xlane.f32.xlu0 %v1256
        %v1295 = vpop.xlane.xlu0 %1294
        %1296 = vadd.xlane.f32.xlu0 %v1257
        %v1297 = vpop.xlane.xlu0 %1296
        %1298 = vadd.xlane.f32.xlu0 %v1258
        %v1299 = vpop.xlane.xlu0 %1298
        %1300 = vadd.xlane.f32.xlu0 %v1259
        %v1301 = vpop.xlane.xlu0 %1300
        %1302 = vadd.xlane.f32.xlu0 %v1260
        %v1303 = vpop.xlane.xlu0 %1302
        %1304 = vadd.xlane.f32.xlu0 %v1261
        %v1305 = vpop.xlane.xlu0 %1304
        %1306 = vadd.xlane.f32.xlu0 %v1262
        %v1307 = vpop.xlane.xlu0 %1306
        %1308 = vadd.xlane.f32.xlu0 %v1263
        %v1309 = vpop.xlane.xlu0 %1308
        %1310 = vadd.xlane.f32.xlu0 %v1264
        %v1311 = vpop.xlane.xlu0 %1310
        %1312 = vadd.xlane.f32.xlu0 %v1265
        %v1313 = vpop.xlane.xlu0 %1312
        %1314 = vadd.xlane.f32.xlu0 %v1266
        %v1315 = vpop.xlane.xlu0 %1314
        %1316 = vadd.xlane.f32.xlu0 %v1267
        %v1317 = vpop.xlane.xlu0 %1316
        %1318 = vadd.xlane.f32.xlu0 %v1268
        %v1319 = vpop.xlane.xlu0 %1318
        %1320 = vadd.xlane.f32.xlu0 %v1269
        %v1321 = vpop.xlane.xlu0 %1320
        %1322 = vadd.xlane.f32.xlu0 %v1270
        %v1323 = vpop.xlane.xlu0 %1322
        %1324 = vadd.xlane.f32.xlu0 %v1271
        %v1325 = vpop.xlane.xlu0 %1324
        %1326 = vadd.xlane.f32.xlu0 %v1272
        %v1327 = vpop.xlane.xlu0 %1326
        %1328 = vadd.xlane.f32.xlu0 %v1273
        %v1329 = vpop.xlane.xlu0 %1328
        %1330 = vadd.xlane.f32.xlu0 %v1274
        %v1331 = vpop.xlane.xlu0 %1330
        %1332 = vadd.xlane.f32.xlu0 %v1275
        %v1333 = vpop.xlane.xlu0 %1332
        %1334 = vadd.xlane.f32.xlu0 %v1276
        %v1335 = vpop.xlane.xlu0 %1334
        %1336 = vadd.xlane.f32.xlu0 %v1277
        %v1337 = vpop.xlane.xlu0 %1336
        %1338 = vadd.xlane.f32.xlu0 %v1278
        %v1339 = vpop.xlane.xlu0 %1338
        %1340 = vadd.xlane.f32.xlu0 %v1279
        %v1341 = vpop.xlane.xlu0 %1340
        %1342 = vadd.xlane.f32.xlu0 %v1280
        %v1343 = vpop.xlane.xlu0 %1342
        %1344 = vadd.xlane.f32.xlu0 %v1281
        %v1345 = vpop.xlane.xlu0 %1344
        %v1346 = vmul.f32 %v1250, %v1250
        %v1347 = vmul.f32 %v1251, %v1251
        %v1348 = vmul.f32 %v1252, %v1252
        %v1349 = vmul.f32 %v1253, %v1253
        %v1350 = vmul.f32 %v1254, %v1254
        %v1351 = vmul.f32 %v1255, %v1255
        %v1352 = vmul.f32 %v1256, %v1256
        %v1353 = vmul.f32 %v1257, %v1257
        %v1354 = vmul.f32 %v1258, %v1258
        %v1355 = vmul.f32 %v1259, %v1259
        %v1356 = vmul.f32 %v1260, %v1260
        %v1357 = vmul.f32 %v1261, %v1261
        %v1358 = vmul.f32 %v1262, %v1262
        %v1359 = vmul.f32 %v1263, %v1263
        %v1360 = vmul.f32 %v1264, %v1264
        %v1361 = vmul.f32 %v1265, %v1265
        %v1362 = vmul.f32 %v1266, %v1266
        %v1363 = vmul.f32 %v1267, %v1267
        %v1364 = vmul.f32 %v1268, %v1268
        %v1365 = vmul.f32 %v1269, %v1269
        %v1366 = vmul.f32 %v1270, %v1270
        %v1367 = vmul.f32 %v1271, %v1271
        %v1368 = vmul.f32 %v1272, %v1272
        %v1369 = vmul.f32 %v1273, %v1273
        %v1370 = vmul.f32 %v1274, %v1274
        %v1371 = vmul.f32 %v1275, %v1275
        %v1372 = vmul.f32 %v1276, %v1276
        %v1373 = vmul.f32 %v1277, %v1277
        %v1374 = vmul.f32 %v1278, %v1278
        %v1375 = vmul.f32 %v1279, %v1279
        %v1376 = vmul.f32 %v1280, %v1280
        %v1377 = vmul.f32 %v1281, %v1281
        %1378 = vadd.xlane.f32.xlu0 %v1346
        %v1379 = vpop.xlane.xlu0 %1378
        %1380 = vadd.xlane.f32.xlu0 %v1347
        %v1381 = vpop.xlane.xlu0 %1380
        %1382 = vadd.xlane.f32.xlu0 %v1348
        %v1383 = vpop.xlane.xlu0 %1382
        %1384 = vadd.xlane.f32.xlu0 %v1349
        %v1385 = vpop.xlane.xlu0 %1384
        %1386 = vadd.xlane.f32.xlu0 %v1350
        %v1387 = vpop.xlane.xlu0 %1386
        %1388 = vadd.xlane.f32.xlu0 %v1351
        %v1389 = vpop.xlane.xlu0 %1388
        %1390 = vadd.xlane.f32.xlu0 %v1352
        %v1391 = vpop.xlane.xlu0 %1390
        %1392 = vadd.xlane.f32.xlu0 %v1353
        %v1393 = vpop.xlane.xlu0 %1392
        %1394 = vadd.xlane.f32.xlu0 %v1354
        %v1395 = vpop.xlane.xlu0 %1394
        %1396 = vadd.xlane.f32.xlu0 %v1355
        %v1397 = vpop.xlane.xlu0 %1396
        %1398 = vadd.xlane.f32.xlu0 %v1356
        %v1399 = vpop.xlane.xlu0 %1398
        %1400 = vadd.xlane.f32.xlu0 %v1357
        %v1401 = vpop.xlane.xlu0 %1400
        %1402 = vadd.xlane.f32.xlu0 %v1358
        %v1403 = vpop.xlane.xlu0 %1402
        %1404 = vadd.xlane.f32.xlu0 %v1359
        %v1405 = vpop.xlane.xlu0 %1404
        %1406 = vadd.xlane.f32.xlu0 %v1360
        %v1407 = vpop.xlane.xlu0 %1406
        %1408 = vadd.xlane.f32.xlu0 %v1361
        %v1409 = vpop.xlane.xlu0 %1408
        %1410 = vadd.xlane.f32.xlu0 %v1362
        %v1411 = vpop.xlane.xlu0 %1410
        %1412 = vadd.xlane.f32.xlu0 %v1363
        %v1413 = vpop.xlane.xlu0 %1412
        %1414 = vadd.xlane.f32.xlu0 %v1364
        %v1415 = vpop.xlane.xlu0 %1414
        %1416 = vadd.xlane.f32.xlu0 %v1365
        %v1417 = vpop.xlane.xlu0 %1416
        %1418 = vadd.xlane.f32.xlu0 %v1366
        %v1419 = vpop.xlane.xlu0 %1418
        %1420 = vadd.xlane.f32.xlu0 %v1367
        %v1421 = vpop.xlane.xlu0 %1420
        %1422 = vadd.xlane.f32.xlu0 %v1368
        %v1423 = vpop.xlane.xlu0 %1422
        %1424 = vadd.xlane.f32.xlu0 %v1369
        %v1425 = vpop.xlane.xlu0 %1424
        %1426 = vadd.xlane.f32.xlu0 %v1370
        %v1427 = vpop.xlane.xlu0 %1426
        %1428 = vadd.xlane.f32.xlu0 %v1371
        %v1429 = vpop.xlane.xlu0 %1428
        %1430 = vadd.xlane.f32.xlu0 %v1372
        %v1431 = vpop.xlane.xlu0 %1430
        %1432 = vadd.xlane.f32.xlu0 %v1373
        %v1433 = vpop.xlane.xlu0 %1432
        %1434 = vadd.xlane.f32.xlu0 %v1374
        %v1435 = vpop.xlane.xlu0 %1434
        %1436 = vadd.xlane.f32.xlu0 %v1375
        %v1437 = vpop.xlane.xlu0 %1436
        %1438 = vadd.xlane.f32.xlu0 %v1376
        %v1439 = vpop.xlane.xlu0 %1438
        %1440 = vadd.xlane.f32.xlu0 %v1377
        %v1441 = vpop.xlane.xlu0 %1440
        %v1442 = vmul.f32 %v1283, 0.0078125
        %v1443 = vmul.f32 %v1285, 0.0078125
        %v1444 = vmul.f32 %v1287, 0.0078125
        %v1445 = vmul.f32 %v1289, 0.0078125
        %v1446 = vmul.f32 %v1291, 0.0078125
        %v1447 = vmul.f32 %v1293, 0.0078125
        %v1448 = vmul.f32 %v1295, 0.0078125
        %v1449 = vmul.f32 %v1297, 0.0078125
        %v1450 = vmul.f32 %v1299, 0.0078125
        %v1451 = vmul.f32 %v1301, 0.0078125
        %v1452 = vmul.f32 %v1303, 0.0078125
        %v1453 = vmul.f32 %v1305, 0.0078125
        %v1454 = vmul.f32 %v1307, 0.0078125
        %v1455 = vmul.f32 %v1309, 0.0078125
        %v1456 = vmul.f32 %v1311, 0.0078125
        %v1457 = vmul.f32 %v1313, 0.0078125
        %v1458 = vmul.f32 %v1315, 0.0078125
        %v1459 = vmul.f32 %v1317, 0.0078125
        %v1460 = vmul.f32 %v1319, 0.0078125
        %v1461 = vmul.f32 %v1321, 0.0078125
        %v1462 = vmul.f32 %v1323, 0.0078125
        %v1463 = vmul.f32 %v1325, 0.0078125
        %v1464 = vmul.f32 %v1327, 0.0078125
        %v1465 = vmul.f32 %v1329, 0.0078125
        %v1466 = vmul.f32 %v1331, 0.0078125
        %v1467 = vmul.f32 %v1333, 0.0078125
        %v1468 = vmul.f32 %v1335, 0.0078125
        %v1469 = vmul.f32 %v1337, 0.0078125
        %v1470 = vmul.f32 %v1339, 0.0078125
        %v1471 = vmul.f32 %v1341, 0.0078125
        %v1472 = vmul.f32 %v1343, 0.0078125
        %v1473 = vmul.f32 %v1345, 0.0078125
        %v1474 = vmul.f32 %v1379, 0.0078125
        %v1475 = vmul.f32 %v1381, 0.0078125
        %v1476 = vmul.f32 %v1383, 0.0078125
        %v1477 = vmul.f32 %v1385, 0.0078125
        %v1478 = vmul.f32 %v1387, 0.0078125
        %v1479 = vmul.f32 %v1389, 0.0078125
        %v1480 = vmul.f32 %v1391, 0.0078125
        %v1481 = vmul.f32 %v1393, 0.0078125
        %v1482 = vmul.f32 %v1395, 0.0078125
        %v1483 = vmul.f32 %v1397, 0.0078125
        %v1484 = vmul.f32 %v1399, 0.0078125
        %v1485 = vmul.f32 %v1401, 0.0078125
        %v1486 = vmul.f32 %v1403, 0.0078125
        %v1487 = vmul.f32 %v1405, 0.0078125
        %v1488 = vmul.f32 %v1407, 0.0078125
        %v1489 = vmul.f32 %v1409, 0.0078125
        %v1490 = vmul.f32 %v1411, 0.0078125
        %v1491 = vmul.f32 %v1413, 0.0078125
        %v1492 = vmul.f32 %v1415, 0.0078125
        %v1493 = vmul.f32 %v1417, 0.0078125
        %v1494 = vmul.f32 %v1419, 0.0078125
        %v1495 = vmul.f32 %v1421, 0.0078125
        %v1496 = vmul.f32 %v1423, 0.0078125
        %v1497 = vmul.f32 %v1425, 0.0078125
        %v1498 = vmul.f32 %v1427, 0.0078125
        %v1499 = vmul.f32 %v1429, 0.0078125
        %v1500 = vmul.f32 %v1431, 0.0078125
        %v1501 = vmul.f32 %v1433, 0.0078125
        %v1502 = vmul.f32 %v1435, 0.0078125
        %v1503 = vmul.f32 %v1437, 0.0078125
        %v1504 = vmul.f32 %v1439, 0.0078125
        %v1505 = vmul.f32 %v1441, 0.0078125
        %v1506 = vmul.f32 %v1442, %v1442
        %v1507 = vmul.f32 %v1443, %v1443
        %v1508 = vmul.f32 %v1444, %v1444
        %v1509 = vmul.f32 %v1445, %v1445
        %v1510 = vmul.f32 %v1446, %v1446
        %v1511 = vmul.f32 %v1447, %v1447
        %v1512 = vmul.f32 %v1448, %v1448
        %v1513 = vmul.f32 %v1449, %v1449
        %v1514 = vmul.f32 %v1450, %v1450
        %v1515 = vmul.f32 %v1451, %v1451
        %v1516 = vmul.f32 %v1452, %v1452
        %v1517 = vmul.f32 %v1453, %v1453
        %v1518 = vmul.f32 %v1454, %v1454
        %v1519 = vmul.f32 %v1455, %v1455
        %v1520 = vmul.f32 %v1456, %v1456
        %v1521 = vmul.f32 %v1457, %v1457
        %v1522 = vmul.f32 %v1458, %v1458
        %v1523 = vmul.f32 %v1459, %v1459
        %v1524 = vmul.f32 %v1460, %v1460
        %v1525 = vmul.f32 %v1461, %v1461
        %v1526 = vmul.f32 %v1462, %v1462
        %v1527 = vmul.f32 %v1463, %v1463
        %v1528 = vmul.f32 %v1464, %v1464
        %v1529 = vmul.f32 %v1465, %v1465
        %v1530 = vmul.f32 %v1466, %v1466
        %v1531 = vmul.f32 %v1467, %v1467
        %v1532 = vmul.f32 %v1468, %v1468
        %v1533 = vmul.f32 %v1469, %v1469
        %v1534 = vmul.f32 %v1470, %v1470
        %v1535 = vmul.f32 %v1471, %v1471
        %v1536 = vmul.f32 %v1472, %v1472
        %v1537 = vmul.f32 %v1473, %v1473
        %v1538 = vsub.f32 %v1474, %v1506
        %v1539 = vsub.f32 %v1475, %v1507
        %v1540 = vsub.f32 %v1476, %v1508
        %v1541 = vsub.f32 %v1477, %v1509
        %v1542 = vsub.f32 %v1478, %v1510
        %v1543 = vsub.f32 %v1479, %v1511
        %v1544 = vsub.f32 %v1480, %v1512
        %v1545 = vsub.f32 %v1481, %v1513
        %v1546 = vsub.f32 %v1482, %v1514
        %v1547 = vsub.f32 %v1483, %v1515
        %v1548 = vsub.f32 %v1484, %v1516
        %v1549 = vsub.f32 %v1485, %v1517
        %v1550 = vsub.f32 %v1486, %v1518
        %v1551 = vsub.f32 %v1487, %v1519
        %v1552 = vsub.f32 %v1488, %v1520
        %v1553 = vsub.f32 %v1489, %v1521
        %v1554 = vsub.f32 %v1490, %v1522
        %v1555 = vsub.f32 %v1491, %v1523
        %v1556 = vsub.f32 %v1492, %v1524
        %v1557 = vsub.f32 %v1493, %v1525
        %v1558 = vsub.f32 %v1494, %v1526
        %v1559 = vsub.f32 %v1495, %v1527
        %v1560 = vsub.f32 %v1496, %v1528
        %v1561 = vsub.f32 %v1497, %v1529
        %v1562 = vsub.f32 %v1498, %v1530
        %v1563 = vsub.f32 %v1499, %v1531
        %v1564 = vsub.f32 %v1500, %v1532
        %v1565 = vsub.f32 %v1501, %v1533
        %v1566 = vsub.f32 %v1502, %v1534
        %v1567 = vsub.f32 %v1503, %v1535
        %v1568 = vsub.f32 %v1504, %v1536
        %v1569 = vsub.f32 %v1505, %v1537
        %v1570 = vadd.f32 %v1538, 1e-05
        %v1571 = vadd.f32 %v1539, 1e-05
        %v1572 = vadd.f32 %v1540, 1e-05
        %v1573 = vadd.f32 %v1541, 1e-05
        %v1574 = vadd.f32 %v1542, 1e-05
        %v1575 = vadd.f32 %v1543, 1e-05
        %v1576 = vadd.f32 %v1544, 1e-05
        %v1577 = vadd.f32 %v1545, 1e-05
        %v1578 = vadd.f32 %v1546, 1e-05
        %v1579 = vadd.f32 %v1547, 1e-05
        %v1580 = vadd.f32 %v1548, 1e-05
        %v1581 = vadd.f32 %v1549, 1e-05
        %v1582 = vadd.f32 %v1550, 1e-05
        %v1583 = vadd.f32 %v1551, 1e-05
        %v1584 = vadd.f32 %v1552, 1e-05
        %v1585 = vadd.f32 %v1553, 1e-05
        %v1586 = vadd.f32 %v1554, 1e-05
        %v1587 = vadd.f32 %v1555, 1e-05
        %v1588 = vadd.f32 %v1556, 1e-05
        %v1589 = vadd.f32 %v1557, 1e-05
        %v1590 = vadd.f32 %v1558, 1e-05
        %v1591 = vadd.f32 %v1559, 1e-05
        %v1592 = vadd.f32 %v1560, 1e-05
        %v1593 = vadd.f32 %v1561, 1e-05
        %v1594 = vadd.f32 %v1562, 1e-05
        %v1595 = vadd.f32 %v1563, 1e-05
        %v1596 = vadd.f32 %v1564, 1e-05
        %v1597 = vadd.f32 %v1565, 1e-05
        %v1598 = vadd.f32 %v1566, 1e-05
        %v1599 = vadd.f32 %v1567, 1e-05
        %v1600 = vadd.f32 %v1568, 1e-05
        %v1601 = vadd.f32 %v1569, 1e-05
        %v1602 = vrsqrt.pop %v1570
        %v1603 = vmul.f32 %v1602, %v1570
        %v1604 = vmul.f32 %v1603, %v1602
        %v1605 = vmul.f32 0.5, %v1604
        %v1606 = vsub.f32 1.5, %v1605
        %v1607 = vmul.f32 %v1602, %v1606
        %vm1608 = vweird.f32 %v1570
        %vm1609 = vweird.f32 %v1602
        %vm1610 = vmor %vm1608, %vm1609
        %v1611 = vsel %vm1610, %v1602, %v1607
        %v1612 = vrsqrt.pop %v1571
        %v1613 = vmul.f32 %v1612, %v1571
        %v1614 = vmul.f32 %v1613, %v1612
        %v1615 = vmul.f32 0.5, %v1614
        %v1616 = vsub.f32 1.5, %v1615
        %v1617 = vmul.f32 %v1612, %v1616
        %vm1618 = vweird.f32 %v1571
        %vm1619 = vweird.f32 %v1612
        %vm1620 = vmor %vm1618, %vm1619
        %v1621 = vsel %vm1620, %v1612, %v1617
        %v1622 = vrsqrt.pop %v1572
        %v1623 = vmul.f32 %v1622, %v1572
        %v1624 = vmul.f32 %v1623, %v1622
        %v1625 = vmul.f32 0.5, %v1624
        %v1626 = vsub.f32 1.5, %v1625
        %v1627 = vmul.f32 %v1622, %v1626
        %vm1628 = vweird.f32 %v1572
        %vm1629 = vweird.f32 %v1622
        %vm1630 = vmor %vm1628, %vm1629
        %v1631 = vsel %vm1630, %v1622, %v1627
        %v1632 = vrsqrt.pop %v1573
        %v1633 = vmul.f32 %v1632, %v1573
        %v1634 = vmul.f32 %v1633, %v1632
        %v1635 = vmul.f32 0.5, %v1634
        %v1636 = vsub.f32 1.5, %v1635
        %v1637 = vmul.f32 %v1632, %v1636
        %vm1638 = vweird.f32 %v1573
        %vm1639 = vweird.f32 %v1632
        %vm1640 = vmor %vm1638, %vm1639
        %v1641 = vsel %vm1640, %v1632, %v1637
        %v1642 = vrsqrt.pop %v1574
        %v1643 = vmul.f32 %v1642, %v1574
        %v1644 = vmul.f32 %v1643, %v1642
        %v1645 = vmul.f32 0.5, %v1644
        %v1646 = vsub.f32 1.5, %v1645
        %v1647 = vmul.f32 %v1642, %v1646
        %vm1648 = vweird.f32 %v1574
        %vm1649 = vweird.f32 %v1642
        %vm1650 = vmor %vm1648, %vm1649
        %v1651 = vsel %vm1650, %v1642, %v1647
        %v1652 = vrsqrt.pop %v1575
        %v1653 = vmul.f32 %v1652, %v1575
        %v1654 = vmul.f32 %v1653, %v1652
        %v1655 = vmul.f32 0.5, %v1654
        %v1656 = vsub.f32 1.5, %v1655
        %v1657 = vmul.f32 %v1652, %v1656
        %vm1658 = vweird.f32 %v1575
        %vm1659 = vweird.f32 %v1652
        %vm1660 = vmor %vm1658, %vm1659
        %v1661 = vsel %vm1660, %v1652, %v1657
        %v1662 = vrsqrt.pop %v1576
        %v1663 = vmul.f32 %v1662, %v1576
        %v1664 = vmul.f32 %v1663, %v1662
        %v1665 = vmul.f32 0.5, %v1664
        %v1666 = vsub.f32 1.5, %v1665
        %v1667 = vmul.f32 %v1662, %v1666
        %vm1668 = vweird.f32 %v1576
        %vm1669 = vweird.f32 %v1662
        %vm1670 = vmor %vm1668, %vm1669
        %v1671 = vsel %vm1670, %v1662, %v1667
        %v1672 = vrsqrt.pop %v1577
        %v1673 = vmul.f32 %v1672, %v1577
        %v1674 = vmul.f32 %v1673, %v1672
        %v1675 = vmul.f32 0.5, %v1674
        %v1676 = vsub.f32 1.5, %v1675
        %v1677 = vmul.f32 %v1672, %v1676
        %vm1678 = vweird.f32 %v1577
        %vm1679 = vweird.f32 %v1672
        %vm1680 = vmor %vm1678, %vm1679
        %v1681 = vsel %vm1680, %v1672, %v1677
        %v1682 = vrsqrt.pop %v1578
        %v1683 = vmul.f32 %v1682, %v1578
        %v1684 = vmul.f32 %v1683, %v1682
        %v1685 = vmul.f32 0.5, %v1684
        %v1686 = vsub.f32 1.5, %v1685
        %v1687 = vmul.f32 %v1682, %v1686
        %vm1688 = vweird.f32 %v1578
        %vm1689 = vweird.f32 %v1682
        %vm1690 = vmor %vm1688, %vm1689
        %v1691 = vsel %vm1690, %v1682, %v1687
        %v1692 = vrsqrt.pop %v1579
        %v1693 = vmul.f32 %v1692, %v1579
        %v1694 = vmul.f32 %v1693, %v1692
        %v1695 = vmul.f32 0.5, %v1694
        %v1696 = vsub.f32 1.5, %v1695
        %v1697 = vmul.f32 %v1692, %v1696
        %vm1698 = vweird.f32 %v1579
        %vm1699 = vweird.f32 %v1692
        %vm1700 = vmor %vm1698, %vm1699
        %v1701 = vsel %vm1700, %v1692, %v1697
        %v1702 = vrsqrt.pop %v1580
        %v1703 = vmul.f32 %v1702, %v1580
        %v1704 = vmul.f32 %v1703, %v1702
        %v1705 = vmul.f32 0.5, %v1704
        %v1706 = vsub.f32 1.5, %v1705
        %v1707 = vmul.f32 %v1702, %v1706
        %vm1708 = vweird.f32 %v1580
        %vm1709 = vweird.f32 %v1702
        %vm1710 = vmor %vm1708, %vm1709
        %v1711 = vsel %vm1710, %v1702, %v1707
        %v1712 = vrsqrt.pop %v1581
        %v1713 = vmul.f32 %v1712, %v1581
        %v1714 = vmul.f32 %v1713, %v1712
        %v1715 = vmul.f32 0.5, %v1714
        %v1716 = vsub.f32 1.5, %v1715
        %v1717 = vmul.f32 %v1712, %v1716
        %vm1718 = vweird.f32 %v1581
        %vm1719 = vweird.f32 %v1712
        %vm1720 = vmor %vm1718, %vm1719
        %v1721 = vsel %vm1720, %v1712, %v1717
        %v1722 = vrsqrt.pop %v1582
        %v1723 = vmul.f32 %v1722, %v1582
        %v1724 = vmul.f32 %v1723, %v1722
        %v1725 = vmul.f32 0.5, %v1724
        %v1726 = vsub.f32 1.5, %v1725
        %v1727 = vmul.f32 %v1722, %v1726
        %vm1728 = vweird.f32 %v1582
        %vm1729 = vweird.f32 %v1722
        %vm1730 = vmor %vm1728, %vm1729
        %v1731 = vsel %vm1730, %v1722, %v1727
        %v1732 = vrsqrt.pop %v1583
        %v1733 = vmul.f32 %v1732, %v1583
        %v1734 = vmul.f32 %v1733, %v1732
        %v1735 = vmul.f32 0.5, %v1734
        %v1736 = vsub.f32 1.5, %v1735
        %v1737 = vmul.f32 %v1732, %v1736
        %vm1738 = vweird.f32 %v1583
        %vm1739 = vweird.f32 %v1732
        %vm1740 = vmor %vm1738, %vm1739
        %v1741 = vsel %vm1740, %v1732, %v1737
        %v1742 = vrsqrt.pop %v1584
        %v1743 = vmul.f32 %v1742, %v1584
        %v1744 = vmul.f32 %v1743, %v1742
        %v1745 = vmul.f32 0.5, %v1744
        %v1746 = vsub.f32 1.5, %v1745
        %v1747 = vmul.f32 %v1742, %v1746
        %vm1748 = vweird.f32 %v1584
        %vm1749 = vweird.f32 %v1742
        %vm1750 = vmor %vm1748, %vm1749
        %v1751 = vsel %vm1750, %v1742, %v1747
        %v1752 = vrsqrt.pop %v1585
        %v1753 = vmul.f32 %v1752, %v1585
        %v1754 = vmul.f32 %v1753, %v1752
        %v1755 = vmul.f32 0.5, %v1754
        %v1756 = vsub.f32 1.5, %v1755
        %v1757 = vmul.f32 %v1752, %v1756
        %vm1758 = vweird.f32 %v1585
        %vm1759 = vweird.f32 %v1752
        %vm1760 = vmor %vm1758, %vm1759
        %v1761 = vsel %vm1760, %v1752, %v1757
        %v1762 = vrsqrt.pop %v1586
        %v1763 = vmul.f32 %v1762, %v1586
        %v1764 = vmul.f32 %v1763, %v1762
        %v1765 = vmul.f32 0.5, %v1764
        %v1766 = vsub.f32 1.5, %v1765
        %v1767 = vmul.f32 %v1762, %v1766
        %vm1768 = vweird.f32 %v1586
        %vm1769 = vweird.f32 %v1762
        %vm1770 = vmor %vm1768, %vm1769
        %v1771 = vsel %vm1770, %v1762, %v1767
        %v1772 = vrsqrt.pop %v1587
        %v1773 = vmul.f32 %v1772, %v1587
        %v1774 = vmul.f32 %v1773, %v1772
        %v1775 = vmul.f32 0.5, %v1774
        %v1776 = vsub.f32 1.5, %v1775
        %v1777 = vmul.f32 %v1772, %v1776
        %vm1778 = vweird.f32 %v1587
        %vm1779 = vweird.f32 %v1772
        %vm1780 = vmor %vm1778, %vm1779
        %v1781 = vsel %vm1780, %v1772, %v1777
        %v1782 = vrsqrt.pop %v1588
        %v1783 = vmul.f32 %v1782, %v1588
        %v1784 = vmul.f32 %v1783, %v1782
        %v1785 = vmul.f32 0.5, %v1784
        %v1786 = vsub.f32 1.5, %v1785
        %v1787 = vmul.f32 %v1782, %v1786
        %vm1788 = vweird.f32 %v1588
        %vm1789 = vweird.f32 %v1782
        %vm1790 = vmor %vm1788, %vm1789
        %v1791 = vsel %vm1790, %v1782, %v1787
        %v1792 = vrsqrt.pop %v1589
        %v1793 = vmul.f32 %v1792, %v1589
        %v1794 = vmul.f32 %v1793, %v1792
        %v1795 = vmul.f32 0.5, %v1794
        %v1796 = vsub.f32 1.5, %v1795
        %v1797 = vmul.f32 %v1792, %v1796
        %vm1798 = vweird.f32 %v1589
        %vm1799 = vweird.f32 %v1792
        %vm1800 = vmor %vm1798, %vm1799
        %v1801 = vsel %vm1800, %v1792, %v1797
        %v1802 = vrsqrt.pop %v1590
        %v1803 = vmul.f32 %v1802, %v1590
        %v1804 = vmul.f32 %v1803, %v1802
        %v1805 = vmul.f32 0.5, %v1804
        %v1806 = vsub.f32 1.5, %v1805
        %v1807 = vmul.f32 %v1802, %v1806
        %vm1808 = vweird.f32 %v1590
        %vm1809 = vweird.f32 %v1802
        %vm1810 = vmor %vm1808, %vm1809
        %v1811 = vsel %vm1810, %v1802, %v1807
        %v1812 = vrsqrt.pop %v1591
        %v1813 = vmul.f32 %v1812, %v1591
        %v1814 = vmul.f32 %v1813, %v1812
        %v1815 = vmul.f32 0.5, %v1814
        %v1816 = vsub.f32 1.5, %v1815
        %v1817 = vmul.f32 %v1812, %v1816
        %vm1818 = vweird.f32 %v1591
        %vm1819 = vweird.f32 %v1812
        %vm1820 = vmor %vm1818, %vm1819
        %v1821 = vsel %vm1820, %v1812, %v1817
        %v1822 = vrsqrt.pop %v1592
        %v1823 = vmul.f32 %v1822, %v1592
        %v1824 = vmul.f32 %v1823, %v1822
        %v1825 = vmul.f32 0.5, %v1824
        %v1826 = vsub.f32 1.5, %v1825
        %v1827 = vmul.f32 %v1822, %v1826
        %vm1828 = vweird.f32 %v1592
        %vm1829 = vweird.f32 %v1822
        %vm1830 = vmor %vm1828, %vm1829
        %v1831 = vsel %vm1830, %v1822, %v1827
        %v1832 = vrsqrt.pop %v1593
        %v1833 = vmul.f32 %v1832, %v1593
        %v1834 = vmul.f32 %v1833, %v1832
        %v1835 = vmul.f32 0.5, %v1834
        %v1836 = vsub.f32 1.5, %v1835
        %v1837 = vmul.f32 %v1832, %v1836
        %vm1838 = vweird.f32 %v1593
        %vm1839 = vweird.f32 %v1832
        %vm1840 = vmor %vm1838, %vm1839
        %v1841 = vsel %vm1840, %v1832, %v1837
        %v1842 = vrsqrt.pop %v1594
        %v1843 = vmul.f32 %v1842, %v1594
        %v1844 = vmul.f32 %v1843, %v1842
        %v1845 = vmul.f32 0.5, %v1844
        %v1846 = vsub.f32 1.5, %v1845
        %v1847 = vmul.f32 %v1842, %v1846
        %vm1848 = vweird.f32 %v1594
        %vm1849 = vweird.f32 %v1842
        %vm1850 = vmor %vm1848, %vm1849
        %v1851 = vsel %vm1850, %v1842, %v1847
        %v1852 = vrsqrt.pop %v1595
        %v1853 = vmul.f32 %v1852, %v1595
        %v1854 = vmul.f32 %v1853, %v1852
        %v1855 = vmul.f32 0.5, %v1854
        %v1856 = vsub.f32 1.5, %v1855
        %v1857 = vmul.f32 %v1852, %v1856
        %vm1858 = vweird.f32 %v1595
        %vm1859 = vweird.f32 %v1852
        %vm1860 = vmor %vm1858, %vm1859
        %v1861 = vsel %vm1860, %v1852, %v1857
        %v1862 = vrsqrt.pop %v1596
        %v1863 = vmul.f32 %v1862, %v1596
        %v1864 = vmul.f32 %v1863, %v1862
        %v1865 = vmul.f32 0.5, %v1864
        %v1866 = vsub.f32 1.5, %v1865
        %v1867 = vmul.f32 %v1862, %v1866
        %vm1868 = vweird.f32 %v1596
        %vm1869 = vweird.f32 %v1862
        %vm1870 = vmor %vm1868, %vm1869
        %v1871 = vsel %vm1870, %v1862, %v1867
        %v1872 = vrsqrt.pop %v1597
        %v1873 = vmul.f32 %v1872, %v1597
        %v1874 = vmul.f32 %v1873, %v1872
        %v1875 = vmul.f32 0.5, %v1874
        %v1876 = vsub.f32 1.5, %v1875
        %v1877 = vmul.f32 %v1872, %v1876
        %vm1878 = vweird.f32 %v1597
        %vm1879 = vweird.f32 %v1872
        %vm1880 = vmor %vm1878, %vm1879
        %v1881 = vsel %vm1880, %v1872, %v1877
        %v1882 = vrsqrt.pop %v1598
        %v1883 = vmul.f32 %v1882, %v1598
        %v1884 = vmul.f32 %v1883, %v1882
        %v1885 = vmul.f32 0.5, %v1884
        %v1886 = vsub.f32 1.5, %v1885
        %v1887 = vmul.f32 %v1882, %v1886
        %vm1888 = vweird.f32 %v1598
        %vm1889 = vweird.f32 %v1882
        %vm1890 = vmor %vm1888, %vm1889
        %v1891 = vsel %vm1890, %v1882, %v1887
        %v1892 = vrsqrt.pop %v1599
        %v1893 = vmul.f32 %v1892, %v1599
        %v1894 = vmul.f32 %v1893, %v1892
        %v1895 = vmul.f32 0.5, %v1894
        %v1896 = vsub.f32 1.5, %v1895
        %v1897 = vmul.f32 %v1892, %v1896
        %vm1898 = vweird.f32 %v1599
        %vm1899 = vweird.f32 %v1892
        %vm1900 = vmor %vm1898, %vm1899
        %v1901 = vsel %vm1900, %v1892, %v1897
        %v1902 = vrsqrt.pop %v1600
        %v1903 = vmul.f32 %v1902, %v1600
        %v1904 = vmul.f32 %v1903, %v1902
        %v1905 = vmul.f32 0.5, %v1904
        %v1906 = vsub.f32 1.5, %v1905
        %v1907 = vmul.f32 %v1902, %v1906
        %vm1908 = vweird.f32 %v1600
        %vm1909 = vweird.f32 %v1902
        %vm1910 = vmor %vm1908, %vm1909
        %v1911 = vsel %vm1910, %v1902, %v1907
        %v1912 = vrsqrt.pop %v1601
        %v1913 = vmul.f32 %v1912, %v1601
        %v1914 = vmul.f32 %v1913, %v1912
        %v1915 = vmul.f32 0.5, %v1914
        %v1916 = vsub.f32 1.5, %v1915
        %v1917 = vmul.f32 %v1912, %v1916
        %vm1918 = vweird.f32 %v1601
        %vm1919 = vweird.f32 %v1912
        %vm1920 = vmor %vm1918, %vm1919
        %v1921 = vsel %vm1920, %v1912, %v1917
        %v1922 = vsub.f32 %v1250, %v1442
        %v1923 = vsub.f32 %v1251, %v1443
        %v1924 = vsub.f32 %v1252, %v1444
        %v1925 = vsub.f32 %v1253, %v1445
        %v1926 = vsub.f32 %v1254, %v1446
        %v1927 = vsub.f32 %v1255, %v1447
        %v1928 = vsub.f32 %v1256, %v1448
        %v1929 = vsub.f32 %v1257, %v1449
        %v1930 = vsub.f32 %v1258, %v1450
        %v1931 = vsub.f32 %v1259, %v1451
        %v1932 = vsub.f32 %v1260, %v1452
        %v1933 = vsub.f32 %v1261, %v1453
        %v1934 = vsub.f32 %v1262, %v1454
        %v1935 = vsub.f32 %v1263, %v1455
        %v1936 = vsub.f32 %v1264, %v1456
        %v1937 = vsub.f32 %v1265, %v1457
        %v1938 = vsub.f32 %v1266, %v1458
        %v1939 = vsub.f32 %v1267, %v1459
        %v1940 = vsub.f32 %v1268, %v1460
        %v1941 = vsub.f32 %v1269, %v1461
        %v1942 = vsub.f32 %v1270, %v1462
        %v1943 = vsub.f32 %v1271, %v1463
        %v1944 = vsub.f32 %v1272, %v1464
        %v1945 = vsub.f32 %v1273, %v1465
        %v1946 = vsub.f32 %v1274, %v1466
        %v1947 = vsub.f32 %v1275, %v1467
        %v1948 = vsub.f32 %v1276, %v1468
        %v1949 = vsub.f32 %v1277, %v1469
        %v1950 = vsub.f32 %v1278, %v1470
        %v1951 = vsub.f32 %v1279, %v1471
        %v1952 = vsub.f32 %v1280, %v1472
        %v1953 = vsub.f32 %v1281, %v1473
        %v1954 = vperm.slane %v313, 1
        %v1955 = vmul.f32 %v1954, %v1611
        %v1956 = vmul.f32 %v1954, %v1621
        %v1957 = vmul.f32 %v1954, %v1631
        %v1958 = vmul.f32 %v1954, %v1641
        %v1959 = vmul.f32 %v1954, %v1651
        %v1960 = vmul.f32 %v1954, %v1661
        %v1961 = vmul.f32 %v1954, %v1671
        %v1962 = vmul.f32 %v1954, %v1681
        %v1963 = vmul.f32 %v1954, %v1691
        %v1964 = vmul.f32 %v1954, %v1701
        %v1965 = vmul.f32 %v1954, %v1711
        %v1966 = vmul.f32 %v1954, %v1721
        %v1967 = vmul.f32 %v1954, %v1731
        %v1968 = vmul.f32 %v1954, %v1741
        %v1969 = vmul.f32 %v1954, %v1751
        %v1970 = vmul.f32 %v1954, %v1761
        %v1971 = vmul.f32 %v1954, %v1771
        %v1972 = vmul.f32 %v1954, %v1781
        %v1973 = vmul.f32 %v1954, %v1791
        %v1974 = vmul.f32 %v1954, %v1801
        %v1975 = vmul.f32 %v1954, %v1811
        %v1976 = vmul.f32 %v1954, %v1821
        %v1977 = vmul.f32 %v1954, %v1831
        %v1978 = vmul.f32 %v1954, %v1841
        %v1979 = vmul.f32 %v1954, %v1851
        %v1980 = vmul.f32 %v1954, %v1861
        %v1981 = vmul.f32 %v1954, %v1871
        %v1982 = vmul.f32 %v1954, %v1881
        %v1983 = vmul.f32 %v1954, %v1891
        %v1984 = vmul.f32 %v1954, %v1901
        %v1985 = vmul.f32 %v1954, %v1911
        %v1986 = vmul.f32 %v1954, %v1921
        %v1987 = vmul.f32 %v1922, %v1955
        %v1988 = vmul.f32 %v1923, %v1956
        %v1989 = vmul.f32 %v1924, %v1957
        %v1990 = vmul.f32 %v1925, %v1958
        %v1991 = vmul.f32 %v1926, %v1959
        %v1992 = vmul.f32 %v1927, %v1960
        %v1993 = vmul.f32 %v1928, %v1961
        %v1994 = vmul.f32 %v1929, %v1962
        %v1995 = vmul.f32 %v1930, %v1963
        %v1996 = vmul.f32 %v1931, %v1964
        %v1997 = vmul.f32 %v1932, %v1965
        %v1998 = vmul.f32 %v1933, %v1966
        %v1999 = vmul.f32 %v1934, %v1967
        %v2000 = vmul.f32 %v1935, %v1968
        %v2001 = vmul.f32 %v1936, %v1969
        %v2002 = vmul.f32 %v1937, %v1970
        %v2003 = vmul.f32 %v1938, %v1971
        %v2004 = vmul.f32 %v1939, %v1972
        %v2005 = vmul.f32 %v1940, %v1973
        %v2006 = vmul.f32 %v1941, %v1974
        %v2007 = vmul.f32 %v1942, %v1975
        %v2008 = vmul.f32 %v1943, %v1976
        %v2009 = vmul.f32 %v1944, %v1977
        %v2010 = vmul.f32 %v1945, %v1978
        %v2011 = vmul.f32 %v1946, %v1979
        %v2012 = vmul.f32 %v1947, %v1980
        %v2013 = vmul.f32 %v1948, %v1981
        %v2014 = vmul.f32 %v1949, %v1982
        %v2015 = vmul.f32 %v1950, %v1983
        %v2016 = vmul.f32 %v1951, %v1984
        %v2017 = vmul.f32 %v1952, %v1985
        %v2018 = vmul.f32 %v1953, %v1986
        %v2019 = vperm.slane %v313, 2
        %v2020 = vadd.f32 %v1987, %v2019
        %v2021 = vadd.f32 %v1988, %v2019
        %v2022 = vadd.f32 %v1989, %v2019
        %v2023 = vadd.f32 %v1990, %v2019
        %v2024 = vadd.f32 %v1991, %v2019
        %v2025 = vadd.f32 %v1992, %v2019
        %v2026 = vadd.f32 %v1993, %v2019
        %v2027 = vadd.f32 %v1994, %v2019
        %v2028 = vadd.f32 %v1995, %v2019
        %v2029 = vadd.f32 %v1996, %v2019
        %v2030 = vadd.f32 %v1997, %v2019
        %v2031 = vadd.f32 %v1998, %v2019
        %v2032 = vadd.f32 %v1999, %v2019
        %v2033 = vadd.f32 %v2000, %v2019
        %v2034 = vadd.f32 %v2001, %v2019
        %v2035 = vadd.f32 %v2002, %v2019
        %v2036 = vadd.f32 %v2003, %v2019
        %v2037 = vadd.f32 %v2004, %v2019
        %v2038 = vadd.f32 %v2005, %v2019
        %v2039 = vadd.f32 %v2006, %v2019
        %v2040 = vadd.f32 %v2007, %v2019
        %v2041 = vadd.f32 %v2008, %v2019
        %v2042 = vadd.f32 %v2009, %v2019
        %v2043 = vadd.f32 %v2010, %v2019
        %v2044 = vadd.f32 %v2011, %v2019
        %v2045 = vadd.f32 %v2012, %v2019
        %v2046 = vadd.f32 %v2013, %v2019
        %v2047 = vadd.f32 %v2014, %v2019
        %v2048 = vadd.f32 %v2015, %v2019
        %v2049 = vadd.f32 %v2016, %v2019
        %v2050 = vadd.f32 %v2017, %v2019
        %v2051 = vadd.f32 %v2018, %v2019
        %2052 = vst [vmem:[%s303] sm:$0xff] %v2020
        %2053 = vst [vmem:[%s303 + $0x8] sm:$0xff] %v2021
        %2054 = vst [vmem:[%s303 + $0x10] sm:$0xff] %v2022
        %2055 = vst [vmem:[%s303 + $0x18] sm:$0xff] %v2023
        %2056 = vst [vmem:[%s303 + $0x20] sm:$0xff] %v2024
        %2057 = vst [vmem:[%s303 + $0x28] sm:$0xff] %v2025
        %2058 = vst [vmem:[%s303 + $0x30] sm:$0xff] %v2026
        %2059 = vst [vmem:[%s303 + $0x38] sm:$0xff] %v2027
        %2060 = vst [vmem:[%s303 + $0x40] sm:$0xff] %v2028
        %2061 = vst [vmem:[%s303 + $0x48] sm:$0xff] %v2029
        %2062 = vst [vmem:[%s303 + $0x50] sm:$0xff] %v2030
        %2063 = vst [vmem:[%s303 + $0x58] sm:$0xff] %v2031
        %2064 = vst [vmem:[%s303 + $0x60] sm:$0xff] %v2032
        %2065 = vst [vmem:[%s303 + $0x68] sm:$0xff] %v2033
        %2066 = vst [vmem:[%s303 + $0x70] sm:$0xff] %v2034
        %2067 = vst [vmem:[%s303 + $0x78] sm:$0xff] %v2035
        %2068 = vst [vmem:[%s303 + $0x80] sm:$0xff] %v2036
        %2069 = vst [vmem:[%s303 + $0x88] sm:$0xff] %v2037
        %2070 = vst [vmem:[%s303 + $0x90] sm:$0xff] %v2038
        %2071 = vst [vmem:[%s303 + $0x98] sm:$0xff] %v2039
        %2072 = vst [vmem:[%s303 + $0xa0] sm:$0xff] %v2040
        %2073 = vst [vmem:[%s303 + $0xa8] sm:$0xff] %v2041
        %2074 = vst [vmem:[%s303 + $0xb0] sm:$0xff] %v2042
        %2075 = vst [vmem:[%s303 + $0xb8] sm:$0xff] %v2043
        %2076 = vst [vmem:[%s303 + $0xc0] sm:$0xff] %v2044
        %2077 = vst [vmem:[%s303 + $0xc8] sm:$0xff] %v2045
        %2078 = vst [vmem:[%s303 + $0xd0] sm:$0xff] %v2046
        %2079 = vst [vmem:[%s303 + $0xd8] sm:$0xff] %v2047
        %2080 = vst [vmem:[%s303 + $0xe0] sm:$0xff] %v2048
        %2081 = vst [vmem:[%s303 + $0xe8] sm:$0xff] %v2049
        %2082 = vst [vmem:[%s303 + $0xf0] sm:$0xff] %v2050
        %2083 = vst [vmem:[%s303 + $0xf8] sm:$0xff] %v2051
        %s2084 = sand.u32 %s131, 1
        %s2085 = scalar_lea.sflag [#allocation5], %s2084
        %s2086 = sand.u32 %s131, 1
        %s2087 = smul.addr %s2086, 256
        %s2088 = scalar_lea.vmem [#allocation11], %s2087
        // Predicated region
        $region53: #{tpu_custom_call.1} parent=35 // pred_check
          %p2089 = pneg %p141
        $region54: #{tpu_custom_call.1} parent=35 // pred_check_branch
          %2091 = sbr.rel (%p2089) target = $region56
        $region55: #{tpu_custom_call.1} parent=35 // pred_region
          %s2092 = smul.u32 32, %s25
          %2094 = vsyncadd %s2085, 0
          %s2095 = smul.addr %s2092, 8
          %s2096 = scalar_lea.hbm %s4, %s2095
          %s2097 = sshll.u32 %s2088, 4
          %s2098 = int_to_ptr.vmem [resolvable:$true] %s2097
          %s2099 = sshll.u32 %s2096, 4
          %s2100 = int_to_ptr.hbm [resolvable:$true] %s2099
          %2105 = dma.vmem_to_hbm [thread:$0]  %s2098, 4096, %s2100, %s2085, 128, 128, 8
        $region56: #{tpu_custom_call.1} parent=35 // pred_fallthru
          _
      $region36: #{tpu_custom_call.1} parent=5 // pred_fallthru
        _
      %p2106 = scmp.le.s32.totalorder 2, %s20
      // Predicated region
      $region57: #{tpu_custom_call.1} parent=5 // pred_check
        %p2107 = pneg %p2106
      $region58: #{tpu_custom_call.1} parent=5 // pred_check_branch
        %2109 = sbr.rel (%p2107) target = $region60
      $region59: #{tpu_custom_call.1} parent=5 // pred_region
        %s2110 = ssub.s32 %s20, 2
        // Predicated region
        $region61: #{tpu_custom_call.1} parent=59 // pred_check
          %p2111 = pneg %p147
        $region62: #{tpu_custom_call.1} parent=59 // pred_check_branch
          %2113 = sbr.rel (%p2111) target = $region64
        $region63: #{tpu_custom_call.1} parent=59 // pred_region
          %s2114 = sand.u32 %s132, 1
          %s2115 = scalar_lea.sflag [#allocation5], %s2114
          %s2116 = sand.u32 %s132, 1
          %s2117 = smul.addr %s2116, 256
          %s2118 = scalar_lea.vmem [#allocation11], %s2117
          %2120 = dma.done %s2115, 4096
        $region64: #{tpu_custom_call.1} parent=59 // pred_fallthru
          _
      $region60: #{tpu_custom_call.1} parent=5 // pred_fallthru
        _
    $region6: #{tpu_custom_call.1} parent=1 // loop_footer
      %s24 = sadd.s32 1, %s20
    $region7: #{tpu_custom_call.1} parent=1 // loop_footer_branch
      %19 = sbr.rel target = $region3
    $region8: #{tpu_custom_call.1} parent=1 // loop_exit
      _
    %2121 = vsyncpa [#allocation4], 1
    %s2122 = scalar_lea.sflag [#allocation4], 1
    %2123 = vsyncpa %s2122, 1
    %2124 = vsyncpa [#allocation7], 1
    %s2125 = scalar_lea.sflag [#allocation7], 1
    %2126 = vsyncpa %s2125, 1
    %2127 = vsyncpa [#allocation10], 1
    %2128 = vsyncpa [#allocation5], 1
    %s2129 = scalar_lea.sflag [#allocation5], 1
    %2130 = vsyncpa %s2129, 1

</llo_original>
